<compile_context>
chip_gen: v6e
topology: v6e:2x2x1
jax: 0.10.0
libtpu: 0.0.40
codegen_flags: <defaults>
</compile_context>

<pallas_src>
import numpy as np
import jax
import jax.numpy as jnp
from jax import lax
from jax.experimental import pallas as pl
from jax.experimental.pallas import tpu as pltpu

H = W = 9                  # input spatial size
C_IN, C1, C2 = 6, 12, 24   # channels
FC1, FC2 = 32, 4           # linear sizes
OUT_PAD = 128              # lane-dense padded output width

H1 = H - 1                 # 8 : conv1 'valid' output
P1 = H1 // 2               # 4 : after maxpool(2)
IN_FLAT = H * W * C_IN     # 486 (NCHW flatten: ci*81 + h*9 + w)
P1_FLAT = P1 * P1 * C1     # 192


def _cdiv(a, b):
    return (a + b - 1) // b


def _round_up(a, b):
    return _cdiv(a, b) * b


# ----------------------------------------------------------------------------
# Kernel: one grid step processes TB images; only matmuls + maxes + adds.
# ----------------------------------------------------------------------------
def cnn_kernel(x_ref, w1t_ref, b1t_ref, w2t_ref, b2_ref,
               fw1_ref, fb1_ref, fw2_ref, fb2_ref, out_ref):
    x = x_ref[...]                                              # (TB, 486) bf16

    # conv1 + ReLU + maxpool(2): one (TB,486)@(486,768) bf16 matmul (the 4
    # pooling offsets concatenated along N), then max over the offset blocks.
    c1 = jnp.dot(x, w1t_ref[...], preferred_element_type=jnp.float32)
    m1 = jnp.maximum(jnp.maximum(c1[:, 0 * P1_FLAT:1 * P1_FLAT],
                                 c1[:, 1 * P1_FLAT:2 * P1_FLAT]),
                     jnp.maximum(c1[:, 2 * P1_FLAT:3 * P1_FLAT],
                                 c1[:, 3 * P1_FLAT:4 * P1_FLAT]))
    p1 = jnp.maximum(m1 + b1t_ref[...], 0.0)                    # (TB, 192) f32

    # conv2 + ReLU + maxpool(2) (floor mode -> top-left 2x2 of 3x3 output):
    # one (TB,192)@(192,96) matmul, then max over the 4 offset blocks.
    c2 = jnp.dot(p1.astype(jnp.bfloat16), w2t_ref[...],
                 preferred_element_type=jnp.float32)
    m2 = jnp.maximum(jnp.maximum(c2[:, 0 * C2:1 * C2], c2[:, 1 * C2:2 * C2]),
                     jnp.maximum(c2[:, 2 * C2:3 * C2], c2[:, 3 * C2:4 * C2]))
    feat = jnp.maximum(m2 + b2_ref[...], 0.0)                   # (TB, 24) f32

    # out1 (24->32) + ReLU, out2 (32->128 padded)
    hid = jnp.maximum(
        jnp.dot(feat.astype(jnp.bfloat16), fw1_ref[...],
                preferred_element_type=jnp.float32) + fb1_ref[...], 0.0)
    out_ref[...] = (jnp.dot(hid.astype(jnp.bfloat16), fw2_ref[...],
                            preferred_element_type=jnp.float32)
                    + fb2_ref[...])                             # (TB, 128)


# ----------------------------------------------------------------------------
# Host-side (numpy) block-Toeplitz construction -- run ONCE per parameter set.
# ----------------------------------------------------------------------------
def _build_conv1_toeplitz(w1):
    """w1 (2,2,C_IN,C1) HWIO -> (486, 4*192), NCHW input row order:
    T[ci*81 + h*9 + w, d*192 + (pi*4+pj)*12 + co] = w1[kh,kw,ci,co]
    with d = di*2+dj, h = 2*pi+di+kh, w = 2*pj+dj+kw."""
    w1 = np.asarray(w1, np.float32)
    T = np.zeros((IN_FLAT, 4 * P1_FLAT), np.float32)
    for di in range(2):
        for dj in range(2):
            d = di * 2 + dj
            for pi in range(P1):
                for pj in range(P1):
                    col = d * P1_FLAT + (pi * P1 + pj) * C1
                    for kh in range(2):
                        for kw in range(2):
                            h = 2 * pi + di + kh
                            w = 2 * pj + dj + kw
                            for ci in range(C_IN):
                                row = ci * H * W + h * W + w
                                T[row, col:col + C1] = w1[kh, kw, ci]
    return T


def _build_conv2_toeplitz(w2):
    """w2 (2,2,C1,C2) HWIO -> (192, 4*24):
    T[(pi*4+pj)*12 + ci, d*24 + co] = w2[kh,kw,ci,co]
    with d = i2*2+j2, pi = i2+kh, pj = j2+kw (pooled 2x2 of the 3x3 output)."""
    w2 = np.asarray(w2, np.float32)
    T = np.zeros((P1_FLAT, 4 * C2), np.float32)
    for i2 in range(2):
        for j2 in range(2):
            d = i2 * 2 + j2
            for kh in range(2):
                for kw in range(2):
                    row = ((i2 + kh) * P1 + (j2 + kw)) * C1
                    T[row:row + C1, d * C2:(d + 1) * C2] = w2[kh, kw]
    return T


def prepare_cnn_params(params):
    """Build Toeplitz / padded weights once (numpy; not jit-compatible).
    Returns the device arrays consumed by cnn_forward."""
    w1, b1, w2, b2, fw1, fb1, fw2, fb2 = params
    w1t = jnp.asarray(_build_conv1_toeplitz(w1), jnp.bfloat16)       # (486, 768)
    w2t = jnp.asarray(_build_conv2_toeplitz(w2), jnp.bfloat16)       # (192, 96)
    b1t = jnp.tile(jnp.reshape(jnp.asarray(b1, jnp.float32), (1, C1)),
                   (1, P1 * P1))                                     # (1, 192)
    b2r = jnp.reshape(jnp.asarray(b2, jnp.float32), (1, C2))         # (1, 24)
    fw1b = jnp.asarray(fw1, jnp.bfloat16)                            # (24, 32)
    fb1r = jnp.reshape(jnp.asarray(fb1, jnp.float32), (1, FC1))      # (1, 32)
    fw2p = np.zeros((FC1, OUT_PAD), np.float32)
    fw2p[:, :FC2] = np.asarray(fw2, np.float32)
    fb2p = np.zeros((1, OUT_PAD), np.float32)
    fb2p[0, :FC2] = np.asarray(fb2, np.float32).reshape(-1)
    return (w1t, b1t, w2t, b2r, fw1b, fb1r,
            jnp.asarray(fw2p, jnp.bfloat16), jnp.asarray(fb2p))


# ----------------------------------------------------------------------------
# Wrapper
# ----------------------------------------------------------------------------
def cnn_forward(x_nchw, prepared, tb_max=512):
    w1t, b1t, w2t, b2r, fw1, fb1r, fw2p, fb2p = prepared
    n = x_nchw.shape[0]

    # NCHW flatten is layout-free (Toeplitz rows are already in NCHW order).
    x = x_nchw.reshape(n, IN_FLAT).astype(jnp.bfloat16)

    # Batch tile: multiple of 8, <= tb_max, keep >=2 grid steps when possible
    # so both v7x TensorCores get work; tiny batches only pad to a multiple of 8.
    n8 = _round_up(n, 8)
    steps = max(_cdiv(n8, tb_max), 2 if n8 >= 16 else 1)
    tb = _round_up(_cdiv(n8, steps), 8)
    n_pad = tb * steps
    if n_pad != n:
        x = jnp.pad(x, ((0, n_pad - n), (0, 0)))

    def full(a):
        return pl.BlockSpec(a.shape, lambda i, _nd=a.ndim: (0,) * _nd)

    out = pl.pallas_call(
        cnn_kernel,
        out_shape=jax.ShapeDtypeStruct((n_pad, OUT_PAD), jnp.float32),
        grid=(steps,),
        in_specs=[
            pl.BlockSpec((tb, IN_FLAT), lambda i: (i, 0)),
            full(w1t), full(b1t), full(w2t), full(b2r),
            full(fw1), full(fb1r), full(fw2p), full(fb2p),
        ],
        out_specs=pl.BlockSpec((tb, OUT_PAD), lambda i: (i, 0)),
        compiler_params=pltpu.CompilerParams(
            dimension_semantics=("parallel",)),
    )(x, w1t, b1t, w2t, b2r, fw1, fb1r, fw2p, fb2p)
    return out[:n, :FC2]


# ----------------------------------------------------------------------------
# Pure-JAX reference of the PyTorch forward pass.
# ----------------------------------------------------------------------------
def ref_forward(x_nchw, params):
    w1, b1, w2, b2, fw1, fb1, fw2, fb2 = params
    x = jnp.transpose(x_nchw, (0, 2, 3, 1))
    dn = ('NHWC', 'HWIO', 'NHWC')
    y = lax.conv_general_dilated(x, w1, (1, 1), 'VALID', dimension_numbers=dn)
    y = jnp.maximum(y + b1.reshape(1, 1, 1, -1), 0.0)
    y = lax.reduce_window(y, -jnp.inf, lax.max, (1, 2, 2, 1), (1, 2, 2, 1), 'VALID')
    y = lax.conv_general_dilated(y, w2, (1, 1), 'VALID', dimension_numbers=dn)
    y = jnp.maximum(y + b2.reshape(1, 1, 1, -1), 0.0)
    y = lax.reduce_window(y, -jnp.inf, lax.max, (1, 2, 2, 1), (1, 2, 2, 1), 'VALID')
    y = y.reshape(y.shape[0], -1)                            # (N, 24)
    y = jnp.maximum(y @ fw1 + fb1.reshape(-1), 0.0)
    return y @ fw2 + fb2.reshape(-1)


if __name__ == "__main__":
    key = jax.random.PRNGKey(0)
    ks = jax.random.split(key, 10)
    params = (
        0.1 * jax.random.normal(ks[0], (2, 2, C_IN, C1), jnp.float32),  # conv1 w (HWIO)
        0.1 * jax.random.normal(ks[1], (1, C1), jnp.float32),           # conv1 b
        0.1 * jax.random.normal(ks[2], (2, 2, C1, C2), jnp.float32),    # conv2 w (HWIO)
        0.1 * jax.random.normal(ks[3], (1, C2), jnp.float32),           # conv2 b
        0.1 * jax.random.normal(ks[4], (C2, FC1), jnp.float32),         # out1 w (in,out)
        0.1 * jax.random.normal(ks[5], (1, FC1), jnp.float32),          # out1 b
        0.1 * jax.random.normal(ks[6], (FC1, FC2), jnp.float32),        # out2 w (in,out)
        0.1 * jax.random.normal(ks[7], (1, FC2), jnp.float32),          # out2 b
    )
    prepared = prepare_cnn_params(params)   # built once, reused for all calls

    # small batch (padded only to one 8-row tile)
    x_small = jax.random.normal(ks[8], (2, C_IN, H, W), jnp.float32)    # PyTorch NCHW
    out = jax.block_until_ready(cnn_forward(x_small, prepared))
    ref = ref_forward(x_small, params)
    assert out.shape == (2, FC2), out.shape
    assert jnp.allclose(out, ref, atol=5e-2, rtol=5e-2), (out, ref)     # bf16 MXU tolerance

    # larger batch exercising multiple grid steps + padding
    x_big = jax.random.normal(ks[9], (300, C_IN, H, W), jnp.float32)
    out_b = jax.block_until_ready(cnn_forward(x_big, prepared))
    ref_b = ref_forward(x_big, params)
    assert out_b.shape == (300, FC2), out_b.shape
    assert jnp.allclose(out_b, ref_b, atol=5e-2, rtol=5e-2)

    print("KERNEL_OK")
</pallas_src>

<mosaic_0001>
module attributes {stable_mosaic.version = 11 : i64} {
  func.func @cnn_kernel(%arg0: i32, %arg1: memref<8x486xbf16, #tpu.memory_space<vmem>>, %arg2: memref<486x768xbf16, #tpu.memory_space<vmem>>, %arg3: memref<1x192xf32, #tpu.memory_space<vmem>>, %arg4: memref<192x96xbf16, #tpu.memory_space<vmem>>, %arg5: memref<1x24xf32, #tpu.memory_space<vmem>>, %arg6: memref<24x32xbf16, #tpu.memory_space<vmem>>, %arg7: memref<1x32xf32, #tpu.memory_space<vmem>>, %arg8: memref<32x128xbf16, #tpu.memory_space<vmem>>, %arg9: memref<1x128xf32, #tpu.memory_space<vmem>>, %arg10: memref<8x128xf32, #tpu.memory_space<vmem>>) attributes {dimension_semantics = [#tpu.dimension_semantics<parallel>], iteration_bounds = array<i64: 1>, scalar_prefetch = 0 : i64, scratch_operands = 0 : i64, tpu.core_type = #tpu.core_type<tc>, window_params = [{transform_indices = @transform_0, window_bounds = array<i64: 8, 486>}, {pipeline_mode = #tpu.pipeline_mode<synchronous>, transform_indices = @transform_1, window_bounds = array<i64: 486, 768>}, {pipeline_mode = #tpu.pipeline_mode<synchronous>, transform_indices = @transform_2, window_bounds = array<i64: 1, 192>}, {pipeline_mode = #tpu.pipeline_mode<synchronous>, transform_indices = @transform_3, window_bounds = array<i64: 192, 96>}, {pipeline_mode = #tpu.pipeline_mode<synchronous>, transform_indices = @transform_4, window_bounds = array<i64: 1, 24>}, {pipeline_mode = #tpu.pipeline_mode<synchronous>, transform_indices = @transform_5, window_bounds = array<i64: 24, 32>}, {pipeline_mode = #tpu.pipeline_mode<synchronous>, transform_indices = @transform_6, window_bounds = array<i64: 1, 32>}, {pipeline_mode = #tpu.pipeline_mode<synchronous>, transform_indices = @transform_7, window_bounds = array<i64: 32, 128>}, {pipeline_mode = #tpu.pipeline_mode<synchronous>, transform_indices = @transform_8, window_bounds = array<i64: 1, 128>}, {transform_indices = @transform_9, window_bounds = array<i64: 8, 128>}]} {
    %c0 = arith.constant 0 : index
    %c0_0 = arith.constant 0 : index
    %0 = vector.load %arg1[%c0, %c0_0] : memref<8x486xbf16, #tpu.memory_space<vmem>>, vector<8x486xbf16>
    %c0_1 = arith.constant 0 : index
    %c0_2 = arith.constant 0 : index
    %1 = vector.load %arg2[%c0_1, %c0_2] : memref<486x768xbf16, #tpu.memory_space<vmem>>, vector<486x768xbf16>
    %cst = arith.constant dense<0.000000e+00> : vector<8x768xf32>
    %2 = tpu.matmul %0, %1, %cst {dimension_numbers = #tpu.dot_dimension_numbers<[1], [0], [0], [1], [0, 0, 1, 1], [], []>} : vector<8x486xbf16>, vector<486x768xbf16>, vector<8x768xf32> -> vector<8x768xf32>
    %3 = vector.extract_strided_slice %2 {offsets = [0, 0], sizes = [8, 192], strides = [1, 1]} : vector<8x768xf32> to vector<8x192xf32>
    %4 = vector.extract_strided_slice %2 {offsets = [0, 192], sizes = [8, 192], strides = [1, 1]} : vector<8x768xf32> to vector<8x192xf32>
    %5 = arith.maximumf %3, %4 : vector<8x192xf32>
    %6 = vector.extract_strided_slice %2 {offsets = [0, 384], sizes = [8, 192], strides = [1, 1]} : vector<8x768xf32> to vector<8x192xf32>
    %7 = vector.extract_strided_slice %2 {offsets = [0, 576], sizes = [8, 192], strides = [1, 1]} : vector<8x768xf32> to vector<8x192xf32>
    %8 = arith.maximumf %6, %7 : vector<8x192xf32>
    %9 = arith.maximumf %5, %8 : vector<8x192xf32>
    %c0_3 = arith.constant 0 : index
    %c0_4 = arith.constant 0 : index
    %10 = vector.load %arg3[%c0_3, %c0_4] : memref<1x192xf32, #tpu.memory_space<vmem>>, vector<1x192xf32>
    %11 = vector.broadcast %10 : vector<1x192xf32> to vector<8x192xf32>
    %12 = arith.addf %9, %11 : vector<8x192xf32>
    %cst_5 = arith.constant 0.000000e+00 : f32
    %13 = vector.broadcast %cst_5 : f32 to vector<8x192xf32>
    %14 = arith.maximumf %12, %13 : vector<8x192xf32>
    %15 = arith.truncf %14 : vector<8x192xf32> to vector<8x192xbf16>
    %c0_6 = arith.constant 0 : index
    %c0_7 = arith.constant 0 : index
    %16 = vector.load %arg4[%c0_6, %c0_7] : memref<192x96xbf16, #tpu.memory_space<vmem>>, vector<192x96xbf16>
    %cst_8 = arith.constant dense<0.000000e+00> : vector<8x96xf32>
    %17 = tpu.matmul %15, %16, %cst_8 {dimension_numbers = #tpu.dot_dimension_numbers<[1], [0], [0], [1], [0, 0, 1, 1], [], []>} : vector<8x192xbf16>, vector<192x96xbf16>, vector<8x96xf32> -> vector<8x96xf32>
    %18 = vector.extract_strided_slice %17 {offsets = [0, 0], sizes = [8, 24], strides = [1, 1]} : vector<8x96xf32> to vector<8x24xf32>
    %19 = vector.extract_strided_slice %17 {offsets = [0, 24], sizes = [8, 24], strides = [1, 1]} : vector<8x96xf32> to vector<8x24xf32>
    %20 = arith.maximumf %18, %19 : vector<8x24xf32>
    %21 = vector.extract_strided_slice %17 {offsets = [0, 48], sizes = [8, 24], strides = [1, 1]} : vector<8x96xf32> to vector<8x24xf32>
    %22 = vector.extract_strided_slice %17 {offsets = [0, 72], sizes = [8, 24], strides = [1, 1]} : vector<8x96xf32> to vector<8x24xf32>
    %23 = arith.maximumf %21, %22 : vector<8x24xf32>
    %24 = arith.maximumf %20, %23 : vector<8x24xf32>
    %c0_9 = arith.constant 0 : index
    %c0_10 = arith.constant 0 : index
    %25 = vector.load %arg5[%c0_9, %c0_10] : memref<1x24xf32, #tpu.memory_space<vmem>>, vector<1x24xf32>
    %26 = vector.broadcast %25 : vector<1x24xf32> to vector<8x24xf32>
    %27 = arith.addf %24, %26 : vector<8x24xf32>
    %cst_11 = arith.constant 0.000000e+00 : f32
    %28 = vector.broadcast %cst_11 : f32 to vector<8x24xf32>
    %29 = arith.maximumf %27, %28 : vector<8x24xf32>
    %30 = arith.truncf %29 : vector<8x24xf32> to vector<8x24xbf16>
    %c0_12 = arith.constant 0 : index
    %c0_13 = arith.constant 0 : index
    %31 = vector.load %arg6[%c0_12, %c0_13] : memref<24x32xbf16, #tpu.memory_space<vmem>>, vector<24x32xbf16>
    %cst_14 = arith.constant dense<0.000000e+00> : vector<8x32xf32>
    %32 = tpu.matmul %30, %31, %cst_14 {dimension_numbers = #tpu.dot_dimension_numbers<[1], [0], [0], [1], [0, 0, 1, 1], [], []>} : vector<8x24xbf16>, vector<24x32xbf16>, vector<8x32xf32> -> vector<8x32xf32>
    %c0_15 = arith.constant 0 : index
    %c0_16 = arith.constant 0 : index
    %33 = vector.load %arg7[%c0_15, %c0_16] : memref<1x32xf32, #tpu.memory_space<vmem>>, vector<1x32xf32>
    %34 = vector.broadcast %33 : vector<1x32xf32> to vector<8x32xf32>
    %35 = arith.addf %32, %34 : vector<8x32xf32>
    %cst_17 = arith.constant 0.000000e+00 : f32
    %36 = vector.broadcast %cst_17 : f32 to vector<8x32xf32>
    %37 = arith.maximumf %35, %36 : vector<8x32xf32>
    %38 = arith.truncf %37 : vector<8x32xf32> to vector<8x32xbf16>
    %c0_18 = arith.constant 0 : index
    %c0_19 = arith.constant 0 : index
    %39 = vector.load %arg8[%c0_18, %c0_19] : memref<32x128xbf16, #tpu.memory_space<vmem>>, vector<32x128xbf16>
    %cst_20 = arith.constant dense<0.000000e+00> : vector<8x128xf32>
    %40 = tpu.matmul %38, %39, %cst_20 {dimension_numbers = #tpu.dot_dimension_numbers<[1], [0], [0], [1], [0, 0, 1, 1], [], []>} : vector<8x32xbf16>, vector<32x128xbf16>, vector<8x128xf32> -> vector<8x128xf32>
    %c0_21 = arith.constant 0 : index
    %c0_22 = arith.constant 0 : index
    %41 = vector.load %arg9[%c0_21, %c0_22] : memref<1x128xf32, #tpu.memory_space<vmem>>, vector<1x128xf32>
    %42 = vector.broadcast %41 : vector<1x128xf32> to vector<8x128xf32>
    %43 = arith.addf %40, %42 : vector<8x128xf32>
    %c0_23 = arith.constant 0 : index
    %c0_24 = arith.constant 0 : index
    %44 = vector.load %arg10[%c0_23, %c0_24] : memref<8x128xf32, #tpu.memory_space<vmem>>, vector<8x128xf32>
    tpu.vector_store %arg10[%c0_23, %c0_24], %43 {strides = array<i32>} : memref<8x128xf32, #tpu.memory_space<vmem>>, vector<8x128xf32>,
    return
  }
  func.func @transform_0(%arg0: i32) -> (i32, i32) {
    %c0_i32 = arith.constant 0 : i32
    %c0_i32_0 = arith.constant 0 : i32
    return %arg0, %c0_i32 : i32, i32
  }
  func.func @transform_1(%arg0: i32) -> (i32, i32) {
    %c0_i32 = arith.constant 0 : i32
    %c0_i32_0 = arith.constant 0 : i32
    %c0_i32_1 = arith.constant 0 : i32
    return %c0_i32, %c0_i32_0 : i32, i32
  }
  func.func @transform_2(%arg0: i32) -> (i32, i32) {
    %c0_i32 = arith.constant 0 : i32
    %c0_i32_0 = arith.constant 0 : i32
    %c0_i32_1 = arith.constant 0 : i32
    return %c0_i32, %c0_i32_0 : i32, i32
  }
  func.func @transform_3(%arg0: i32) -> (i32, i32) {
    %c0_i32 = arith.constant 0 : i32
    %c0_i32_0 = arith.constant 0 : i32
    %c0_i32_1 = arith.constant 0 : i32
    return %c0_i32, %c0_i32_0 : i32, i32
  }
  func.func @transform_4(%arg0: i32) -> (i32, i32) {
    %c0_i32 = arith.constant 0 : i32
    %c0_i32_0 = arith.constant 0 : i32
    %c0_i32_1 = arith.constant 0 : i32
    return %c0_i32, %c0_i32_0 : i32, i32
  }
  func.func @transform_5(%arg0: i32) -> (i32, i32) {
    %c0_i32 = arith.constant 0 : i32
    %c0_i32_0 = arith.constant 0 : i32
    %c0_i32_1 = arith.constant 0 : i32
    return %c0_i32, %c0_i32_0 : i32, i32
  }
  func.func @transform_6(%arg0: i32) -> (i32, i32) {
    %c0_i32 = arith.constant 0 : i32
    %c0_i32_0 = arith.constant 0 : i32
    %c0_i32_1 = arith.constant 0 : i32
    return %c0_i32, %c0_i32_0 : i32, i32
  }
  func.func @transform_7(%arg0: i32) -> (i32, i32) {
    %c0_i32 = arith.constant 0 : i32
    %c0_i32_0 = arith.constant 0 : i32
    %c0_i32_1 = arith.constant 0 : i32
    return %c0_i32, %c0_i32_0 : i32, i32
  }
  func.func @transform_8(%arg0: i32) -> (i32, i32) {
    %c0_i32 = arith.constant 0 : i32
    %c0_i32_0 = arith.constant 0 : i32
    %c0_i32_1 = arith.constant 0 : i32
    return %c0_i32, %c0_i32_0 : i32, i32
  }
  func.func @transform_9(%arg0: i32) -> (i32, i32) {
    %c0_i32 = arith.constant 0 : i32
    %c0_i32_0 = arith.constant 0 : i32
    return %arg0, %c0_i32 : i32, i32
  }
}

</mosaic_0001>

<llo_original>
// kernel: tpu_custom_call.1
$region0: #{tpu_custom_call.1}
  #allocation0 [shape = 'u32[]', space=smem, size = 0x4, offset = 0x4, fixed_abs, tag = 'smem constant byte address 0x4 - core index']
  #allocation1 [shape = 'u32[144,128]{1,0:T(1,128)}', space=vmem, size = 0x12000, scoped, tag = 'internal scratch']
  %s0 = inlined_call_operand.hbm [shape: bf16[8,486], index: 0, kind: input, shape index: {}]
  %s1 = inlined_call_operand.hbm [shape: bf16[486,768], index: 1, kind: input, shape index: {}]
  %s2 = inlined_call_operand.vmem [shape: f32[1,192], index: 2, kind: input, shape index: {}]
  %s3 = inlined_call_operand.hbm [shape: bf16[192,96], index: 3, kind: input, shape index: {}]
  %s4 = inlined_call_operand.vmem [shape: f32[1,24], index: 4, kind: input, shape index: {}]
  %s5 = inlined_call_operand.hbm [shape: bf16[24,32], index: 5, kind: input, shape index: {}]
  %s6 = inlined_call_operand.vmem [shape: f32[1,32], index: 6, kind: input, shape index: {}]
  %s7 = inlined_call_operand.hbm [shape: bf16[32,128], index: 7, kind: input, shape index: {}]
  %s8 = inlined_call_operand.vmem [shape: f32[1,128], index: 8, kind: input, shape index: {}]
  %s9 = inlined_call_operand.hbm [shape: f32[8,128], index: 9, kind: output, shape index: {}]
  %s10 = sld [smem:[#allocation0]]
  $region66: #{tpu_custom_call.1} parent=0
    _
  %s12 = ssub.s32 1, %s10
  %s13 = scalar_select 0, %s12, %s10
  $region1: #{tpu_custom_call.1} parent=0
    #allocation2 [shape = 'u8[8192]{0}', space=vmem, size = 0x2000, scoped, tag = 'input window, operand 0, single buffered']
    #allocation3 [shape = 's32[1]{0}', space=sflag, size = 0x4, scoped, tag = 'scoped memory for tpu_custom_call.1']
    #allocation4 [shape = 's32[1]{0}', space=sflag, size = 0x4, scoped, tag = 'scoped memory for tpu_custom_call.1']
    #allocation5 [shape = 'u8[749568]{0}', space=vmem, size = 0xb7000, scoped, tag = 'input window, operand 1, single buffered']
    #allocation6 [shape = 's32[1]{0}', space=sflag, size = 0x4, scoped, tag = 'scoped memory for tpu_custom_call.1']
    #allocation7 [shape = 'u8[49152]{0}', space=vmem, size = 0xc000, scoped, tag = 'input window, operand 3, single buffered']
    #allocation8 [shape = 'u8[6144]{0}', space=vmem, size = 0x1800, scoped, tag = 'input window, operand 5, single buffered']
    #allocation9 [shape = 's32[1]{0}', space=sflag, size = 0x4, scoped, tag = 'scoped memory for tpu_custom_call.1']
    #allocation10 [shape = 'u8[8192]{0}', space=vmem, size = 0x2000, scoped, tag = 'input window, operand 7, single buffered']
    #allocation11 [shape = 'u8[4096]{0}', space=vmem, size = 0x1000, scoped, tag = 'output window, operand 0, single buffered']
    %14 = vsyncpa [#allocation3], 0
    %15 = vsyncpa [#allocation6], 0
    %16 = vsyncpa [#allocation9], 0
    %17 = vsyncpa [#allocation4], 0
    // Predicated region
    $region2: #{tpu_custom_call.1} parent=1 // pred_check
      _
    $region3: #{tpu_custom_call.1} parent=1 // pred_check_branch
      %19 = sbr.rel (0) target = $region5
    $region4: #{tpu_custom_call.1} parent=1 // pred_region
      %s21 = ssub.s32 256, 256
      %22 = vsyncadd [#allocation3], %s21
      %s24 = sshll.u32 [#allocation2], 4
      %s25 = int_to_ptr.vmem [resolvable:$true] %s24
      %27 = dma.hbm_to_vmem [thread:$0]  %s0, 256, %s25, [#allocation3]
    $region5: #{tpu_custom_call.1} parent=1 // pred_fallthru
      _
    // Predicated region
    $region6: #{tpu_custom_call.1} parent=1 // pred_check
      _
    $region7: #{tpu_custom_call.1} parent=1 // pred_check_branch
      %29 = sbr.rel (0) target = $region9
    $region8: #{tpu_custom_call.1} parent=1 // pred_region
      %s31 = ssub.s32 23424, 23424
      %32 = vsyncadd [#allocation6], %s31
      %s33 = sshll.u32 [#allocation5], 4
      %s34 = int_to_ptr.vmem [resolvable:$true] %s33
      %39 = dma.hbm_to_vmem [thread:$0]  %s1, 23424, %s34, [#allocation6], 384, 384, 24
    $region9: #{tpu_custom_call.1} parent=1 // pred_fallthru
      _
    // Predicated region
    $region10: #{tpu_custom_call.1} parent=1 // pred_check
      _
    $region11: #{tpu_custom_call.1} parent=1 // pred_check_branch
      %41 = sbr.rel (0) target = $region13
    $region12: #{tpu_custom_call.1} parent=1 // pred_region
      _
    $region13: #{tpu_custom_call.1} parent=1 // pred_fallthru
      _
    // Predicated region
    $region14: #{tpu_custom_call.1} parent=1 // pred_check
      _
    $region15: #{tpu_custom_call.1} parent=1 // pred_check_branch
      %43 = sbr.rel (0) target = $region17
    $region16: #{tpu_custom_call.1} parent=1 // pred_region
      %s45 = ssub.s32 1536, 1536
      %46 = vsyncadd [#allocation6], %s45
      %s47 = sshll.u32 [#allocation7], 4
      %s48 = int_to_ptr.vmem [resolvable:$true] %s47
      %53 = dma.hbm_to_vmem [thread:$0]  %s3, 1536, %s48, [#allocation6], 64, 64, 4
    $region17: #{tpu_custom_call.1} parent=1 // pred_fallthru
      _
    // Predicated region
    $region18: #{tpu_custom_call.1} parent=1 // pred_check
      _
    $region19: #{tpu_custom_call.1} parent=1 // pred_check_branch
      %55 = sbr.rel (0) target = $region21
    $region20: #{tpu_custom_call.1} parent=1 // pred_region
      _
    $region21: #{tpu_custom_call.1} parent=1 // pred_fallthru
      _
    // Predicated region
    $region22: #{tpu_custom_call.1} parent=1 // pred_check
      _
    $region23: #{tpu_custom_call.1} parent=1 // pred_check_branch
      %57 = sbr.rel (0) target = $region25
    $region24: #{tpu_custom_call.1} parent=1 // pred_region
      %s59 = ssub.s32 192, 192
      %60 = vsyncadd [#allocation9], %s59
      %s61 = sshll.u32 [#allocation8], 4
      %s62 = int_to_ptr.vmem [resolvable:$true] %s61
      %67 = dma.hbm_to_vmem [thread:$0]  %s5, 192, %s62, [#allocation9], 64, 64, 4
    $region25: #{tpu_custom_call.1} parent=1 // pred_fallthru
      _
    // Predicated region
    $region26: #{tpu_custom_call.1} parent=1 // pred_check
      _
    $region27: #{tpu_custom_call.1} parent=1 // pred_check_branch
      %69 = sbr.rel (0) target = $region29
    $region28: #{tpu_custom_call.1} parent=1 // pred_region
      _
    $region29: #{tpu_custom_call.1} parent=1 // pred_fallthru
      _
    // Predicated region
    $region30: #{tpu_custom_call.1} parent=1 // pred_check
      _
    $region31: #{tpu_custom_call.1} parent=1 // pred_check_branch
      %71 = sbr.rel (0) target = $region33
    $region32: #{tpu_custom_call.1} parent=1 // pred_region
      %s73 = ssub.s32 256, 256
      %74 = vsyncadd [#allocation9], %s73
      %s75 = sshll.u32 [#allocation10], 4
      %s76 = int_to_ptr.vmem [resolvable:$true] %s75
      %81 = dma.hbm_to_vmem [thread:$0]  %s7, 256, %s76, [#allocation9], 64, 64, 4
    $region33: #{tpu_custom_call.1} parent=1 // pred_fallthru
      _
    // Predicated region
    $region34: #{tpu_custom_call.1} parent=1 // pred_check
      _
    $region35: #{tpu_custom_call.1} parent=1 // pred_check_branch
      %83 = sbr.rel (0) target = $region37
    $region36: #{tpu_custom_call.1} parent=1 // pred_region
      _
    $region37: #{tpu_custom_call.1} parent=1 // pred_fallthru
      _
    // Predicated region
    $region38: #{tpu_custom_call.1} parent=1 // pred_check
      _
    $region39: #{tpu_custom_call.1} parent=1 // pred_check_branch
      %85 = sbr.rel (0) target = $region41
    $region40: #{tpu_custom_call.1} parent=1 // pred_region
      %86 = dma.done [#allocation3], 256
    $region41: #{tpu_custom_call.1} parent=1 // pred_fallthru
      _
    // Predicated region
    $region42: #{tpu_custom_call.1} parent=1 // pred_check
      _
    $region43: #{tpu_custom_call.1} parent=1 // pred_check_branch
      %88 = sbr.rel (0) target = $region45
    $region44: #{tpu_custom_call.1} parent=1 // pred_region
      %89 = dma.done [#allocation6], 23424
    $region45: #{tpu_custom_call.1} parent=1 // pred_fallthru
      _
    // Predicated region
    $region46: #{tpu_custom_call.1} parent=1 // pred_check
      _
    $region47: #{tpu_custom_call.1} parent=1 // pred_check_branch
      %91 = sbr.rel (0) target = $region49
    $region48: #{tpu_custom_call.1} parent=1 // pred_region
      %92 = dma.done [#allocation6], 1536
    $region49: #{tpu_custom_call.1} parent=1 // pred_fallthru
      _
    // Predicated region
    $region50: #{tpu_custom_call.1} parent=1 // pred_check
      _
    $region51: #{tpu_custom_call.1} parent=1 // pred_check_branch
      %94 = sbr.rel (0) target = $region53
    $region52: #{tpu_custom_call.1} parent=1 // pred_region
      %95 = dma.done [#allocation9], 192
    $region53: #{tpu_custom_call.1} parent=1 // pred_fallthru
      _
    // Predicated region
    $region54: #{tpu_custom_call.1} parent=1 // pred_check
      _
    $region55: #{tpu_custom_call.1} parent=1 // pred_check_branch
      %97 = sbr.rel (0) target = $region57
    $region56: #{tpu_custom_call.1} parent=1 // pred_region
      %98 = dma.done [#allocation9], 256
    $region57: #{tpu_custom_call.1} parent=1 // pred_fallthru
      _
    %v100 = vld [vmem:[#allocation2] sm:$0xff]
    %v101 = vld [vmem:[#allocation2 + $0x8] sm:$0xff]
    %v102 = vld [vmem:[#allocation5] sm:$0xff]
    %v103 = vld [vmem:[#allocation5 + $0x8] sm:$0xff]
    %v104 = vld [vmem:[#allocation5 + $0x10] sm:$0xff]
    %v105 = vld [vmem:[#allocation5 + $0x18] sm:$0xff]
    %v106 = vld [vmem:[#allocation5 + $0x20] sm:$0xff]
    %v107 = vld [vmem:[#allocation5 + $0x28] sm:$0xff]
    %v108 = vld [vmem:[#allocation5 + $0x30] sm:$0xff]
    %v109 = vld [vmem:[#allocation5 + $0x38] sm:$0xff]
    %v110 = vld [vmem:[#allocation5 + $0x40] sm:$0xff]
    %v111 = vld [vmem:[#allocation5 + $0x48] sm:$0xff]
    %v112 = vld [vmem:[#allocation5 + $0x50] sm:$0xff]
    %v113 = vld [vmem:[#allocation5 + $0x58] sm:$0xff]
    %v114 = vld [vmem:[#allocation5 + $0x60] sm:$0xff]
    %v115 = vld [vmem:[#allocation5 + $0x68] sm:$0xff]
    %v116 = vld [vmem:[#allocation5 + $0x70] sm:$0xff]
    %v117 = vld [vmem:[#allocation5 + $0x78] sm:$0xff]
    %v118 = vld [vmem:[#allocation5 + $0x80] sm:$0xff]
    %v119 = vld [vmem:[#allocation5 + $0x88] sm:$0xff]
    %v120 = vld [vmem:[#allocation5 + $0x90] sm:$0xff]
    %v121 = vld [vmem:[#allocation5 + $0x98] sm:$0xff]
    %v122 = vld [vmem:[#allocation5 + $0xa0] sm:$0xff]
    %v123 = vld [vmem:[#allocation5 + $0xa8] sm:$0xff]
    %v124 = vld [vmem:[#allocation5 + $0xb0] sm:$0xff]
    %v125 = vld [vmem:[#allocation5 + $0xb8] sm:$0xff]
    %v126 = vld [vmem:[#allocation5 + $0xc0] sm:$0xff]
    %v127 = vld [vmem:[#allocation5 + $0xc8] sm:$0xff]
    %v128 = vld [vmem:[#allocation5 + $0xd0] sm:$0xff]
    %v129 = vld [vmem:[#allocation5 + $0xd8] sm:$0xff]
    %v130 = vld [vmem:[#allocation5 + $0xe0] sm:$0xff]
    %v131 = vld [vmem:[#allocation5 + $0xe8] sm:$0xff]
    %v132 = vld [vmem:[#allocation5 + $0xf0] sm:$0xff]
    %v133 = vld [vmem:[#allocation5 + $0xf8] sm:$0xff]
    %v134 = vld [vmem:[#allocation5 + $0x100] sm:$0xff]
    %v135 = vld [vmem:[#allocation5 + $0x108] sm:$0xff]
    %v136 = vld [vmem:[#allocation5 + $0x110] sm:$0xff]
    %v137 = vld [vmem:[#allocation5 + $0x118] sm:$0xff]
    %v138 = vld [vmem:[#allocation5 + $0x120] sm:$0xff]
    %v139 = vld [vmem:[#allocation5 + $0x128] sm:$0xff]
    %v140 = vld [vmem:[#allocation5 + $0x130] sm:$0xff]
    %v141 = vld [vmem:[#allocation5 + $0x138] sm:$0xff]
    %v142 = vld [vmem:[#allocation5 + $0x140] sm:$0xff]
    %v143 = vld [vmem:[#allocation5 + $0x148] sm:$0xff]
    %v144 = vld [vmem:[#allocation5 + $0x150] sm:$0xff]
    %v145 = vld [vmem:[#allocation5 + $0x158] sm:$0xff]
    %v146 = vld [vmem:[#allocation5 + $0x160] sm:$0xff]
    %v147 = vld [vmem:[#allocation5 + $0x168] sm:$0xff]
    %v148 = vld [vmem:[#allocation5 + $0x170] sm:$0xff]
    %v149 = vld [vmem:[#allocation5 + $0x178] sm:$0xff]
    %v150 = vld [vmem:[#allocation5 + $0x180] sm:$0xff]
    %v151 = vld [vmem:[#allocation5 + $0x188] sm:$0xff]
    %v152 = vld [vmem:[#allocation5 + $0x190] sm:$0xff]
    %v153 = vld [vmem:[#allocation5 + $0x198] sm:$0xff]
    %v154 = vld [vmem:[#allocation5 + $0x1a0] sm:$0xff]
    %v155 = vld [vmem:[#allocation5 + $0x1a8] sm:$0xff]
    %v156 = vld [vmem:[#allocation5 + $0x1b0] sm:$0xff]
    %v157 = vld [vmem:[#allocation5 + $0x1b8] sm:$0xff]
    %v158 = vld [vmem:[#allocation5 + $0x1c0] sm:$0xff]
    %v159 = vld [vmem:[#allocation5 + $0x1c8] sm:$0xff]
    %v160 = vld [vmem:[#allocation5 + $0x1d0] sm:$0xff]
    %v161 = vld [vmem:[#allocation5 + $0x1d8] sm:$0xff]
    %v162 = vld [vmem:[#allocation5 + $0x1e0] sm:$0xff]
    %v163 = vld [vmem:[#allocation5 + $0x1e8] sm:$0xff]
    %v164 = vld [vmem:[#allocation5 + $0x1f0] sm:$0xff]
    %v165 = vld [vmem:[#allocation5 + $0x1f8] sm:$0xff]
    %v166 = vld [vmem:[#allocation5 + $0x200] sm:$0xff]
    %v167 = vld [vmem:[#allocation5 + $0x208] sm:$0xff]
    %v168 = vld [vmem:[#allocation5 + $0x210] sm:$0xff]
    %v169 = vld [vmem:[#allocation5 + $0x218] sm:$0xff]
    %v170 = vld [vmem:[#allocation5 + $0x220] sm:$0xff]
    %v171 = vld [vmem:[#allocation5 + $0x228] sm:$0xff]
    %v172 = vld [vmem:[#allocation5 + $0x230] sm:$0xff]
    %v173 = vld [vmem:[#allocation5 + $0x238] sm:$0xff]
    %v174 = vld [vmem:[#allocation5 + $0x240] sm:$0xff]
    %v175 = vld [vmem:[#allocation5 + $0x248] sm:$0xff]
    %v176 = vld [vmem:[#allocation5 + $0x250] sm:$0xff]
    %v177 = vld [vmem:[#allocation5 + $0x258] sm:$0xff]
    %v178 = vld [vmem:[#allocation5 + $0x260] sm:$0xff]
    %v179 = vld [vmem:[#allocation5 + $0x268] sm:$0xff]
    %v180 = vld [vmem:[#allocation5 + $0x270] sm:$0xff]
    %v181 = vld [vmem:[#allocation5 + $0x278] sm:$0xff]
    %v182 = vld [vmem:[#allocation5 + $0x280] sm:$0xff]
    %v183 = vld [vmem:[#allocation5 + $0x288] sm:$0xff]
    %v184 = vld [vmem:[#allocation5 + $0x290] sm:$0xff]
    %v185 = vld [vmem:[#allocation5 + $0x298] sm:$0xff]
    %v186 = vld [vmem:[#allocation5 + $0x2a0] sm:$0xff]
    %v187 = vld [vmem:[#allocation5 + $0x2a8] sm:$0xff]
    %v188 = vld [vmem:[#allocation5 + $0x2b0] sm:$0xff]
    %v189 = vld [vmem:[#allocation5 + $0x2b8] sm:$0xff]
    %v190 = vld [vmem:[#allocation5 + $0x2c0] sm:$0xff]
    %v191 = vld [vmem:[#allocation5 + $0x2c8] sm:$0xff]
    %v192 = vld [vmem:[#allocation5 + $0x2d0] sm:$0xff]
    %v193 = vld [vmem:[#allocation5 + $0x2d8] sm:$0xff]
    %v194 = vld [vmem:[#allocation5 + $0x2e0] sm:$0xff]
    %v195 = vld [vmem:[#allocation5 + $0x2e8] sm:$0xff]
    %v196 = vld [vmem:[#allocation5 + $0x2f0] sm:$0xff]
    %v197 = vld [vmem:[#allocation5 + $0x2f8] sm:$0xff]
    %v198 = vld [vmem:[#allocation5 + $0x300] sm:$0xff]
    %v199 = vld [vmem:[#allocation5 + $0x308] sm:$0xff]
    %v200 = vld [vmem:[#allocation5 + $0x310] sm:$0xff]
    %v201 = vld [vmem:[#allocation5 + $0x318] sm:$0xff]
    %v202 = vld [vmem:[#allocation5 + $0x320] sm:$0xff]
    %v203 = vld [vmem:[#allocation5 + $0x328] sm:$0xff]
    %v204 = vld [vmem:[#allocation5 + $0x330] sm:$0xff]
    %v205 = vld [vmem:[#allocation5 + $0x338] sm:$0xff]
    %v206 = vld [vmem:[#allocation5 + $0x340] sm:$0xff]
    %v207 = vld [vmem:[#allocation5 + $0x348] sm:$0xff]
    %v208 = vld [vmem:[#allocation5 + $0x350] sm:$0xff]
    %v209 = vld [vmem:[#allocation5 + $0x358] sm:$0xff]
    %v210 = vld [vmem:[#allocation5 + $0x360] sm:$0xff]
    %v211 = vld [vmem:[#allocation5 + $0x368] sm:$0xff]
    %v212 = vld [vmem:[#allocation5 + $0x370] sm:$0xff]
    %v213 = vld [vmem:[#allocation5 + $0x378] sm:$0xff]
    %v214 = vld [vmem:[#allocation5 + $0x380] sm:$0xff]
    %v215 = vld [vmem:[#allocation5 + $0x388] sm:$0xff]
    %v216 = vld [vmem:[#allocation5 + $0x390] sm:$0xff]
    %v217 = vld [vmem:[#allocation5 + $0x398] sm:$0xff]
    %v218 = vld [vmem:[#allocation5 + $0x3a0] sm:$0xff]
    %v219 = vld [vmem:[#allocation5 + $0x3a8] sm:$0xff]
    %v220 = vld [vmem:[#allocation5 + $0x3b0] sm:$0xff]
    %v221 = vld [vmem:[#allocation5 + $0x3b8] sm:$0xff]
    %v222 = vld [vmem:[#allocation5 + $0x3c0] sm:$0xff]
    %v223 = vld [vmem:[#allocation5 + $0x3c8] sm:$0xff]
    %v224 = vld [vmem:[#allocation5 + $0x3d0] sm:$0xff]
    %v225 = vld [vmem:[#allocation5 + $0x3d8] sm:$0xff]
    %v226 = vld [vmem:[#allocation5 + $0x3e0] sm:$0xff]
    %v227 = vld [vmem:[#allocation5 + $0x3e8] sm:$0xff]
    %v228 = vld [vmem:[#allocation5 + $0x3f0] sm:$0xff]
    %v229 = vld [vmem:[#allocation5 + $0x3f8] sm:$0xff]
    %v230 = vld [vmem:[#allocation5 + $0x400] sm:$0xff]
    %v231 = vld [vmem:[#allocation5 + $0x408] sm:$0xff]
    %v232 = vld [vmem:[#allocation5 + $0x410] sm:$0xff]
    %v233 = vld [vmem:[#allocation5 + $0x418] sm:$0xff]
    %v234 = vld [vmem:[#allocation5 + $0x420] sm:$0xff]
    %v235 = vld [vmem:[#allocation5 + $0x428] sm:$0xff]
    %v236 = vld [vmem:[#allocation5 + $0x430] sm:$0xff]
    %v237 = vld [vmem:[#allocation5 + $0x438] sm:$0xff]
    %v238 = vld [vmem:[#allocation5 + $0x440] sm:$0xff]
    %v239 = vld [vmem:[#allocation5 + $0x448] sm:$0xff]
    %v240 = vld [vmem:[#allocation5 + $0x450] sm:$0xff]
    %v241 = vld [vmem:[#allocation5 + $0x458] sm:$0xff]
    %v242 = vld [vmem:[#allocation5 + $0x460] sm:$0xff]
    %v243 = vld [vmem:[#allocation5 + $0x468] sm:$0xff]
    %v244 = vld [vmem:[#allocation5 + $0x470] sm:$0xff]
    %v245 = vld [vmem:[#allocation5 + $0x478] sm:$0xff]
    %v246 = vld [vmem:[#allocation5 + $0x480] sm:$0xff]
    %v247 = vld [vmem:[#allocation5 + $0x488] sm:$0xff]
    %v248 = vld [vmem:[#allocation5 + $0x490] sm:$0xff]
    %v249 = vld [vmem:[#allocation5 + $0x498] sm:$0xff]
    %v250 = vld [vmem:[#allocation5 + $0x4a0] sm:$0xff]
    %v251 = vld [vmem:[#allocation5 + $0x4a8] sm:$0xff]
    %v252 = vld [vmem:[#allocation5 + $0x4b0] sm:$0xff]
    %v253 = vld [vmem:[#allocation5 + $0x4b8] sm:$0xff]
    %v254 = vld [vmem:[#allocation5 + $0x4c0] sm:$0xff]
    %v255 = vld [vmem:[#allocation5 + $0x4c8] sm:$0xff]
    %v256 = vld [vmem:[#allocation5 + $0x4d0] sm:$0xff]
    %v257 = vld [vmem:[#allocation5 + $0x4d8] sm:$0xff]
    %v258 = vld [vmem:[#allocation5 + $0x4e0] sm:$0xff]
    %v259 = vld [vmem:[#allocation5 + $0x4e8] sm:$0xff]
    %v260 = vld [vmem:[#allocation5 + $0x4f0] sm:$0xff]
    %v261 = vld [vmem:[#allocation5 + $0x4f8] sm:$0xff]
    %v262 = vld [vmem:[#allocation5 + $0x500] sm:$0xff]
    %v263 = vld [vmem:[#allocation5 + $0x508] sm:$0xff]
    %v264 = vld [vmem:[#allocation5 + $0x510] sm:$0xff]
    %v265 = vld [vmem:[#allocation5 + $0x518] sm:$0xff]
    %v266 = vld [vmem:[#allocation5 + $0x520] sm:$0xff]
    %v267 = vld [vmem:[#allocation5 + $0x528] sm:$0xff]
    %v268 = vld [vmem:[#allocation5 + $0x530] sm:$0xff]
    %v269 = vld [vmem:[#allocation5 + $0x538] sm:$0xff]
    %v270 = vld [vmem:[#allocation5 + $0x540] sm:$0xff]
    %v271 = vld [vmem:[#allocation5 + $0x548] sm:$0xff]
    %v272 = vld [vmem:[#allocation5 + $0x550] sm:$0xff]
    %v273 = vld [vmem:[#allocation5 + $0x558] sm:$0xff]
    %v274 = vld [vmem:[#allocation5 + $0x560] sm:$0xff]
    %v275 = vld [vmem:[#allocation5 + $0x568] sm:$0xff]
    %v276 = vld [vmem:[#allocation5 + $0x570] sm:$0xff]
    %v277 = vld [vmem:[#allocation5 + $0x578] sm:$0xff]
    %v278 = vld [vmem:[#allocation5 + $0x580] sm:$0xff]
    %v279 = vld [vmem:[#allocation5 + $0x588] sm:$0xff]
    %v280 = vld [vmem:[#allocation5 + $0x590] sm:$0xff]
    %v281 = vld [vmem:[#allocation5 + $0x598] sm:$0xff]
    %v282 = vld [vmem:[#allocation5 + $0x5a0] sm:$0x77]
    %v283 = vld [vmem:[#allocation5 + $0x5a8] sm:$0x77]
    %v284 = vld [vmem:[#allocation5 + $0x5b0] sm:$0x77]
    %v287 = vunpack.c.l.b16 %v100
    %v288 = vunpack.c.h.b16 %v100
    %v289 = vunpack.c.l.b16 %v101
    %v290 = vunpack.c.h.b16 %v101
    %v291 = vpack.c.b16 %v287, %v287
    %v292 = vpack.c.b16 %v288, %v288
    %v293 = vpack.c.b16 %v289, %v289
    %v294 = vpack.c.b16 %v290, %v290
    %v481 = vunpack.c.l.b16 %v102
    %v482 = vunpack.c.h.b16 %v102
    %v483 = vunpack.c.l.b16 %v103
    %v484 = vunpack.c.h.b16 %v103
    %v485 = vunpack.c.l.b16 %v104
    %v486 = vunpack.c.h.b16 %v104
    %v487 = vunpack.c.l.b16 %v105
    %v488 = vunpack.c.h.b16 %v105
    %v489 = vunpack.c.l.b16 %v106
    %v490 = vunpack.c.h.b16 %v106
    %v491 = vunpack.c.l.b16 %v107
    %v492 = vunpack.c.h.b16 %v107
    %v493 = vunpack.c.l.b16 %v108
    %v494 = vunpack.c.h.b16 %v108
    %v495 = vunpack.c.l.b16 %v109
    %v496 = vunpack.c.h.b16 %v109
    %v497 = vunpack.c.l.b16 %v110
    %v498 = vunpack.c.h.b16 %v110
    %v499 = vunpack.c.l.b16 %v111
    %v500 = vunpack.c.h.b16 %v111
    %v501 = vunpack.c.l.b16 %v112
    %v502 = vunpack.c.h.b16 %v112
    %v503 = vunpack.c.l.b16 %v113
    %v504 = vunpack.c.h.b16 %v113
    %v505 = vunpack.c.l.b16 %v114
    %v506 = vunpack.c.h.b16 %v114
    %v507 = vunpack.c.l.b16 %v115
    %v508 = vunpack.c.h.b16 %v115
    %v509 = vunpack.c.l.b16 %v116
    %v510 = vunpack.c.h.b16 %v116
    %v511 = vunpack.c.l.b16 %v117
    %v512 = vunpack.c.h.b16 %v117
    %v513 = vunpack.c.l.b16 %v118
    %v514 = vunpack.c.h.b16 %v118
    %v515 = vunpack.c.l.b16 %v119
    %v516 = vunpack.c.h.b16 %v119
    %v517 = vunpack.c.l.b16 %v120
    %v518 = vunpack.c.h.b16 %v120
    %v519 = vunpack.c.l.b16 %v121
    %v520 = vunpack.c.h.b16 %v121
    %v521 = vunpack.c.l.b16 %v122
    %v522 = vunpack.c.h.b16 %v122
    %v523 = vunpack.c.l.b16 %v123
    %v524 = vunpack.c.h.b16 %v123
    %v525 = vunpack.c.l.b16 %v124
    %v526 = vunpack.c.h.b16 %v124
    %v527 = vunpack.c.l.b16 %v125
    %v528 = vunpack.c.h.b16 %v125
    %v529 = vunpack.c.l.b16 %v126
    %v530 = vunpack.c.h.b16 %v126
    %v531 = vunpack.c.l.b16 %v127
    %v532 = vunpack.c.h.b16 %v127
    %v533 = vunpack.c.l.b16 %v128
    %v534 = vunpack.c.h.b16 %v128
    %v535 = vunpack.c.l.b16 %v129
    %v536 = vunpack.c.h.b16 %v129
    %v537 = vunpack.c.l.b16 %v130
    %v538 = vunpack.c.h.b16 %v130
    %v539 = vunpack.c.l.b16 %v131
    %v540 = vunpack.c.h.b16 %v131
    %v541 = vunpack.c.l.b16 %v132
    %v542 = vunpack.c.h.b16 %v132
    %v543 = vunpack.c.l.b16 %v133
    %v544 = vunpack.c.h.b16 %v133
    %v545 = vunpack.c.l.b16 %v134
    %v546 = vunpack.c.h.b16 %v134
    %v547 = vunpack.c.l.b16 %v135
    %v548 = vunpack.c.h.b16 %v135
    %v549 = vunpack.c.l.b16 %v136
    %v550 = vunpack.c.h.b16 %v136
    %v551 = vunpack.c.l.b16 %v137
    %v552 = vunpack.c.h.b16 %v137
    %v553 = vunpack.c.l.b16 %v138
    %v554 = vunpack.c.h.b16 %v138
    %v555 = vunpack.c.l.b16 %v139
    %v556 = vunpack.c.h.b16 %v139
    %v557 = vunpack.c.l.b16 %v140
    %v558 = vunpack.c.h.b16 %v140
    %v559 = vunpack.c.l.b16 %v141
    %v560 = vunpack.c.h.b16 %v141
    %v561 = vunpack.c.l.b16 %v142
    %v562 = vunpack.c.h.b16 %v142
    %v563 = vunpack.c.l.b16 %v143
    %v564 = vunpack.c.h.b16 %v143
    %v565 = vunpack.c.l.b16 %v144
    %v566 = vunpack.c.h.b16 %v144
    %v567 = vunpack.c.l.b16 %v145
    %v568 = vunpack.c.h.b16 %v145
    %v569 = vunpack.c.l.b16 %v146
    %v570 = vunpack.c.h.b16 %v146
    %v571 = vunpack.c.l.b16 %v147
    %v572 = vunpack.c.h.b16 %v147
    %v573 = vunpack.c.l.b16 %v148
    %v574 = vunpack.c.h.b16 %v148
    %v575 = vunpack.c.l.b16 %v149
    %v576 = vunpack.c.h.b16 %v149
    %v577 = vunpack.c.l.b16 %v150
    %v578 = vunpack.c.h.b16 %v150
    %v579 = vunpack.c.l.b16 %v151
    %v580 = vunpack.c.h.b16 %v151
    %v581 = vunpack.c.l.b16 %v152
    %v582 = vunpack.c.h.b16 %v152
    %v583 = vunpack.c.l.b16 %v153
    %v584 = vunpack.c.h.b16 %v153
    %v585 = vunpack.c.l.b16 %v154
    %v586 = vunpack.c.h.b16 %v154
    %v587 = vunpack.c.l.b16 %v155
    %v588 = vunpack.c.h.b16 %v155
    %v589 = vunpack.c.l.b16 %v156
    %v590 = vunpack.c.h.b16 %v156
    %v591 = vunpack.c.l.b16 %v157
    %v592 = vunpack.c.h.b16 %v157
    %v593 = vunpack.c.l.b16 %v158
    %v594 = vunpack.c.h.b16 %v158
    %v595 = vunpack.c.l.b16 %v159
    %v596 = vunpack.c.h.b16 %v159
    %v597 = vunpack.c.l.b16 %v160
    %v598 = vunpack.c.h.b16 %v160
    %v599 = vunpack.c.l.b16 %v161
    %v600 = vunpack.c.h.b16 %v161
    %v601 = vunpack.c.l.b16 %v162
    %v602 = vunpack.c.h.b16 %v162
    %v603 = vunpack.c.l.b16 %v163
    %v604 = vunpack.c.h.b16 %v163
    %v605 = vunpack.c.l.b16 %v164
    %v606 = vunpack.c.h.b16 %v164
    %v607 = vunpack.c.l.b16 %v165
    %v608 = vunpack.c.h.b16 %v165
    %v609 = vunpack.c.l.b16 %v166
    %v610 = vunpack.c.h.b16 %v166
    %v611 = vunpack.c.l.b16 %v167
    %v612 = vunpack.c.h.b16 %v167
    %v613 = vunpack.c.l.b16 %v168
    %v614 = vunpack.c.h.b16 %v168
    %v615 = vunpack.c.l.b16 %v169
    %v616 = vunpack.c.h.b16 %v169
    %v617 = vunpack.c.l.b16 %v170
    %v618 = vunpack.c.h.b16 %v170
    %v619 = vunpack.c.l.b16 %v171
    %v620 = vunpack.c.h.b16 %v171
    %v621 = vunpack.c.l.b16 %v172
    %v622 = vunpack.c.h.b16 %v172
    %v623 = vunpack.c.l.b16 %v173
    %v624 = vunpack.c.h.b16 %v173
    %v625 = vunpack.c.l.b16 %v174
    %v626 = vunpack.c.h.b16 %v174
    %v627 = vunpack.c.l.b16 %v175
    %v628 = vunpack.c.h.b16 %v175
    %v629 = vunpack.c.l.b16 %v176
    %v630 = vunpack.c.h.b16 %v176
    %v631 = vunpack.c.l.b16 %v177
    %v632 = vunpack.c.h.b16 %v177
    %v633 = vunpack.c.l.b16 %v178
    %v634 = vunpack.c.h.b16 %v178
    %v635 = vunpack.c.l.b16 %v179
    %v636 = vunpack.c.h.b16 %v179
    %v637 = vunpack.c.l.b16 %v180
    %v638 = vunpack.c.h.b16 %v180
    %v639 = vunpack.c.l.b16 %v181
    %v640 = vunpack.c.h.b16 %v181
    %v641 = vunpack.c.l.b16 %v182
    %v642 = vunpack.c.h.b16 %v182
    %v643 = vunpack.c.l.b16 %v183
    %v644 = vunpack.c.h.b16 %v183
    %v645 = vunpack.c.l.b16 %v184
    %v646 = vunpack.c.h.b16 %v184
    %v647 = vunpack.c.l.b16 %v185
    %v648 = vunpack.c.h.b16 %v185
    %v649 = vunpack.c.l.b16 %v186
    %v650 = vunpack.c.h.b16 %v186
    %v651 = vunpack.c.l.b16 %v187
    %v652 = vunpack.c.h.b16 %v187
    %v653 = vunpack.c.l.b16 %v188
    %v654 = vunpack.c.h.b16 %v188
    %v655 = vunpack.c.l.b16 %v189
    %v656 = vunpack.c.h.b16 %v189
    %v657 = vunpack.c.l.b16 %v190
    %v658 = vunpack.c.h.b16 %v190
    %v659 = vunpack.c.l.b16 %v191
    %v660 = vunpack.c.h.b16 %v191
    %v661 = vunpack.c.l.b16 %v192
    %v662 = vunpack.c.h.b16 %v192
    %v663 = vunpack.c.l.b16 %v193
    %v664 = vunpack.c.h.b16 %v193
    %v665 = vunpack.c.l.b16 %v194
    %v666 = vunpack.c.h.b16 %v194
    %v667 = vunpack.c.l.b16 %v195
    %v668 = vunpack.c.h.b16 %v195
    %v669 = vunpack.c.l.b16 %v196
    %v670 = vunpack.c.h.b16 %v196
    %v671 = vunpack.c.l.b16 %v197
    %v672 = vunpack.c.h.b16 %v197
    %v673 = vunpack.c.l.b16 %v198
    %v674 = vunpack.c.h.b16 %v198
    %v675 = vunpack.c.l.b16 %v199
    %v676 = vunpack.c.h.b16 %v199
    %v677 = vunpack.c.l.b16 %v200
    %v678 = vunpack.c.h.b16 %v200
    %v679 = vunpack.c.l.b16 %v201
    %v680 = vunpack.c.h.b16 %v201
    %v681 = vunpack.c.l.b16 %v202
    %v682 = vunpack.c.h.b16 %v202
    %v683 = vunpack.c.l.b16 %v203
    %v684 = vunpack.c.h.b16 %v203
    %v685 = vunpack.c.l.b16 %v204
    %v686 = vunpack.c.h.b16 %v204
    %v687 = vunpack.c.l.b16 %v205
    %v688 = vunpack.c.h.b16 %v205
    %v689 = vunpack.c.l.b16 %v206
    %v690 = vunpack.c.h.b16 %v206
    %v691 = vunpack.c.l.b16 %v207
    %v692 = vunpack.c.h.b16 %v207
    %v693 = vunpack.c.l.b16 %v208
    %v694 = vunpack.c.h.b16 %v208
    %v695 = vunpack.c.l.b16 %v209
    %v696 = vunpack.c.h.b16 %v209
    %v697 = vunpack.c.l.b16 %v210
    %v698 = vunpack.c.h.b16 %v210
    %v699 = vunpack.c.l.b16 %v211
    %v700 = vunpack.c.h.b16 %v211
    %v701 = vunpack.c.l.b16 %v212
    %v702 = vunpack.c.h.b16 %v212
    %v703 = vunpack.c.l.b16 %v213
    %v704 = vunpack.c.h.b16 %v213
    %v705 = vunpack.c.l.b16 %v214
    %v706 = vunpack.c.h.b16 %v214
    %v707 = vunpack.c.l.b16 %v215
    %v708 = vunpack.c.h.b16 %v215
    %v709 = vunpack.c.l.b16 %v216
    %v710 = vunpack.c.h.b16 %v216
    %v711 = vunpack.c.l.b16 %v217
    %v712 = vunpack.c.h.b16 %v217
    %v713 = vunpack.c.l.b16 %v218
    %v714 = vunpack.c.h.b16 %v218
    %v715 = vunpack.c.l.b16 %v219
    %v716 = vunpack.c.h.b16 %v219
    %v717 = vunpack.c.l.b16 %v220
    %v718 = vunpack.c.h.b16 %v220
    %v719 = vunpack.c.l.b16 %v221
    %v720 = vunpack.c.h.b16 %v221
    %v721 = vunpack.c.l.b16 %v222
    %v722 = vunpack.c.h.b16 %v222
    %v723 = vunpack.c.l.b16 %v223
    %v724 = vunpack.c.h.b16 %v223
    %v725 = vunpack.c.l.b16 %v224
    %v726 = vunpack.c.h.b16 %v224
    %v727 = vunpack.c.l.b16 %v225
    %v728 = vunpack.c.h.b16 %v225
    %v729 = vunpack.c.l.b16 %v226
    %v730 = vunpack.c.h.b16 %v226
    %v731 = vunpack.c.l.b16 %v227
    %v732 = vunpack.c.h.b16 %v227
    %v733 = vunpack.c.l.b16 %v228
    %v734 = vunpack.c.h.b16 %v228
    %v735 = vunpack.c.l.b16 %v229
    %v736 = vunpack.c.h.b16 %v229
    %v737 = vunpack.c.l.b16 %v230
    %v738 = vunpack.c.h.b16 %v230
    %v739 = vunpack.c.l.b16 %v231
    %v740 = vunpack.c.h.b16 %v231
    %v741 = vunpack.c.l.b16 %v232
    %v742 = vunpack.c.h.b16 %v232
    %v743 = vunpack.c.l.b16 %v233
    %v744 = vunpack.c.h.b16 %v233
    %v745 = vunpack.c.l.b16 %v234
    %v746 = vunpack.c.h.b16 %v234
    %v747 = vunpack.c.l.b16 %v235
    %v748 = vunpack.c.h.b16 %v235
    %v749 = vunpack.c.l.b16 %v236
    %v750 = vunpack.c.h.b16 %v236
    %v751 = vunpack.c.l.b16 %v237
    %v752 = vunpack.c.h.b16 %v237
    %v753 = vunpack.c.l.b16 %v238
    %v754 = vunpack.c.h.b16 %v238
    %v755 = vunpack.c.l.b16 %v239
    %v756 = vunpack.c.h.b16 %v239
    %v757 = vunpack.c.l.b16 %v240
    %v758 = vunpack.c.h.b16 %v240
    %v759 = vunpack.c.l.b16 %v241
    %v760 = vunpack.c.h.b16 %v241
    %v761 = vunpack.c.l.b16 %v242
    %v762 = vunpack.c.h.b16 %v242
    %v763 = vunpack.c.l.b16 %v243
    %v764 = vunpack.c.h.b16 %v243
    %v765 = vunpack.c.l.b16 %v244
    %v766 = vunpack.c.h.b16 %v244
    %v767 = vunpack.c.l.b16 %v245
    %v768 = vunpack.c.h.b16 %v245
    %v769 = vunpack.c.l.b16 %v246
    %v770 = vunpack.c.h.b16 %v246
    %v771 = vunpack.c.l.b16 %v247
    %v772 = vunpack.c.h.b16 %v247
    %v773 = vunpack.c.l.b16 %v248
    %v774 = vunpack.c.h.b16 %v248
    %v775 = vunpack.c.l.b16 %v249
    %v776 = vunpack.c.h.b16 %v249
    %v777 = vunpack.c.l.b16 %v250
    %v778 = vunpack.c.h.b16 %v250
    %v779 = vunpack.c.l.b16 %v251
    %v780 = vunpack.c.h.b16 %v251
    %v781 = vunpack.c.l.b16 %v252
    %v782 = vunpack.c.h.b16 %v252
    %v783 = vunpack.c.l.b16 %v253
    %v784 = vunpack.c.h.b16 %v253
    %v785 = vunpack.c.l.b16 %v254
    %v786 = vunpack.c.h.b16 %v254
    %v787 = vunpack.c.l.b16 %v255
    %v788 = vunpack.c.h.b16 %v255
    %v789 = vunpack.c.l.b16 %v256
    %v790 = vunpack.c.h.b16 %v256
    %v791 = vunpack.c.l.b16 %v257
    %v792 = vunpack.c.h.b16 %v257
    %v793 = vunpack.c.l.b16 %v258
    %v794 = vunpack.c.h.b16 %v258
    %v795 = vunpack.c.l.b16 %v259
    %v796 = vunpack.c.h.b16 %v259
    %v797 = vunpack.c.l.b16 %v260
    %v798 = vunpack.c.h.b16 %v260
    %v799 = vunpack.c.l.b16 %v261
    %v800 = vunpack.c.h.b16 %v261
    %v801 = vunpack.c.l.b16 %v262
    %v802 = vunpack.c.h.b16 %v262
    %v803 = vunpack.c.l.b16 %v263
    %v804 = vunpack.c.h.b16 %v263
    %v805 = vunpack.c.l.b16 %v264
    %v806 = vunpack.c.h.b16 %v264
    %v807 = vunpack.c.l.b16 %v265
    %v808 = vunpack.c.h.b16 %v265
    %v809 = vunpack.c.l.b16 %v266
    %v810 = vunpack.c.h.b16 %v266
    %v811 = vunpack.c.l.b16 %v267
    %v812 = vunpack.c.h.b16 %v267
    %v813 = vunpack.c.l.b16 %v268
    %v814 = vunpack.c.h.b16 %v268
    %v815 = vunpack.c.l.b16 %v269
    %v816 = vunpack.c.h.b16 %v269
    %v817 = vunpack.c.l.b16 %v270
    %v818 = vunpack.c.h.b16 %v270
    %v819 = vunpack.c.l.b16 %v271
    %v820 = vunpack.c.h.b16 %v271
    %v821 = vunpack.c.l.b16 %v272
    %v822 = vunpack.c.h.b16 %v272
    %v823 = vunpack.c.l.b16 %v273
    %v824 = vunpack.c.h.b16 %v273
    %v825 = vunpack.c.l.b16 %v274
    %v826 = vunpack.c.h.b16 %v274
    %v827 = vunpack.c.l.b16 %v275
    %v828 = vunpack.c.h.b16 %v275
    %v829 = vunpack.c.l.b16 %v276
    %v830 = vunpack.c.h.b16 %v276
    %v831 = vunpack.c.l.b16 %v277
    %v832 = vunpack.c.h.b16 %v277
    %v833 = vunpack.c.l.b16 %v278
    %v834 = vunpack.c.h.b16 %v278
    %v835 = vunpack.c.l.b16 %v279
    %v836 = vunpack.c.h.b16 %v279
    %v837 = vunpack.c.l.b16 %v280
    %v838 = vunpack.c.h.b16 %v280
    %v839 = vunpack.c.l.b16 %v281
    %v840 = vunpack.c.h.b16 %v281
    %v841 = vunpack.c.l.b16 %v282
    %v842 = vunpack.c.h.b16 %v282
    %v843 = vunpack.c.l.b16 %v283
    %v844 = vunpack.c.h.b16 %v283
    %v845 = vunpack.c.l.b16 %v284
    %v846 = vunpack.c.h.b16 %v284
    %v847 = vpack.c.b16 %v487, %v481
    %v848 = vpack.c.b16 %v488, %v482
    %v849 = vpack.c.b16 %v489, %v483
    %v850 = vpack.c.b16 %v490, %v484
    %v851 = vpack.c.b16 %v491, %v485
    %v852 = vpack.c.b16 %v492, %v486
    %v853 = vpack.c.b16 %v499, %v493
    %v854 = vpack.c.b16 %v500, %v494
    %v855 = vpack.c.b16 %v501, %v495
    %v856 = vpack.c.b16 %v502, %v496
    %v857 = vpack.c.b16 %v503, %v497
    %v858 = vpack.c.b16 %v504, %v498
    %v859 = vpack.c.b16 %v511, %v505
    %v860 = vpack.c.b16 %v512, %v506
    %v861 = vpack.c.b16 %v513, %v507
    %v862 = vpack.c.b16 %v514, %v508
    %v863 = vpack.c.b16 %v515, %v509
    %v864 = vpack.c.b16 %v516, %v510
    %v865 = vpack.c.b16 %v523, %v517
    %v866 = vpack.c.b16 %v524, %v518
    %v867 = vpack.c.b16 %v525, %v519
    %v868 = vpack.c.b16 %v526, %v520
    %v869 = vpack.c.b16 %v527, %v521
    %v870 = vpack.c.b16 %v528, %v522
    %v871 = vpack.c.b16 %v535, %v529
    %v872 = vpack.c.b16 %v536, %v530
    %v873 = vpack.c.b16 %v537, %v531
    %v874 = vpack.c.b16 %v538, %v532
    %v875 = vpack.c.b16 %v539, %v533
    %v876 = vpack.c.b16 %v540, %v534
    %v877 = vpack.c.b16 %v547, %v541
    %v878 = vpack.c.b16 %v548, %v542
    %v879 = vpack.c.b16 %v549, %v543
    %v880 = vpack.c.b16 %v550, %v544
    %v881 = vpack.c.b16 %v551, %v545
    %v882 = vpack.c.b16 %v552, %v546
    %v883 = vpack.c.b16 %v559, %v553
    %v884 = vpack.c.b16 %v560, %v554
    %v885 = vpack.c.b16 %v561, %v555
    %v886 = vpack.c.b16 %v562, %v556
    %v887 = vpack.c.b16 %v563, %v557
    %v888 = vpack.c.b16 %v564, %v558
    %v889 = vpack.c.b16 %v571, %v565
    %v890 = vpack.c.b16 %v572, %v566
    %v891 = vpack.c.b16 %v573, %v567
    %v892 = vpack.c.b16 %v574, %v568
    %v893 = vpack.c.b16 %v575, %v569
    %v894 = vpack.c.b16 %v576, %v570
    %v895 = vpack.c.b16 %v583, %v577
    %v896 = vpack.c.b16 %v584, %v578
    %v897 = vpack.c.b16 %v585, %v579
    %v898 = vpack.c.b16 %v586, %v580
    %v899 = vpack.c.b16 %v587, %v581
    %v900 = vpack.c.b16 %v588, %v582
    %v901 = vpack.c.b16 %v595, %v589
    %v902 = vpack.c.b16 %v596, %v590
    %v903 = vpack.c.b16 %v597, %v591
    %v904 = vpack.c.b16 %v598, %v592
    %v905 = vpack.c.b16 %v599, %v593
    %v906 = vpack.c.b16 %v600, %v594
    %v907 = vpack.c.b16 %v607, %v601
    %v908 = vpack.c.b16 %v608, %v602
    %v909 = vpack.c.b16 %v609, %v603
    %v910 = vpack.c.b16 %v610, %v604
    %v911 = vpack.c.b16 %v611, %v605
    %v912 = vpack.c.b16 %v612, %v606
    %v913 = vpack.c.b16 %v619, %v613
    %v914 = vpack.c.b16 %v620, %v614
    %v915 = vpack.c.b16 %v621, %v615
    %v916 = vpack.c.b16 %v622, %v616
    %v917 = vpack.c.b16 %v623, %v617
    %v918 = vpack.c.b16 %v624, %v618
    %v919 = vpack.c.b16 %v631, %v625
    %v920 = vpack.c.b16 %v632, %v626
    %v921 = vpack.c.b16 %v633, %v627
    %v922 = vpack.c.b16 %v634, %v628
    %v923 = vpack.c.b16 %v635, %v629
    %v924 = vpack.c.b16 %v636, %v630
    %v925 = vpack.c.b16 %v643, %v637
    %v926 = vpack.c.b16 %v644, %v638
    %v927 = vpack.c.b16 %v645, %v639
    %v928 = vpack.c.b16 %v646, %v640
    %v929 = vpack.c.b16 %v647, %v641
    %v930 = vpack.c.b16 %v648, %v642
    %v931 = vpack.c.b16 %v655, %v649
    %v932 = vpack.c.b16 %v656, %v650
    %v933 = vpack.c.b16 %v657, %v651
    %v934 = vpack.c.b16 %v658, %v652
    %v935 = vpack.c.b16 %v659, %v653
    %v936 = vpack.c.b16 %v660, %v654
    %v937 = vpack.c.b16 %v667, %v661
    %v938 = vpack.c.b16 %v668, %v662
    %v939 = vpack.c.b16 %v669, %v663
    %v940 = vpack.c.b16 %v670, %v664
    %v941 = vpack.c.b16 %v671, %v665
    %v942 = vpack.c.b16 %v672, %v666
    %v943 = vpack.c.b16 %v679, %v673
    %v944 = vpack.c.b16 %v680, %v674
    %v945 = vpack.c.b16 %v681, %v675
    %v946 = vpack.c.b16 %v682, %v676
    %v947 = vpack.c.b16 %v683, %v677
    %v948 = vpack.c.b16 %v684, %v678
    %v949 = vpack.c.b16 %v691, %v685
    %v950 = vpack.c.b16 %v692, %v686
    %v951 = vpack.c.b16 %v693, %v687
    %v952 = vpack.c.b16 %v694, %v688
    %v953 = vpack.c.b16 %v695, %v689
    %v954 = vpack.c.b16 %v696, %v690
    %v955 = vpack.c.b16 %v703, %v697
    %v956 = vpack.c.b16 %v704, %v698
    %v957 = vpack.c.b16 %v705, %v699
    %v958 = vpack.c.b16 %v706, %v700
    %v959 = vpack.c.b16 %v707, %v701
    %v960 = vpack.c.b16 %v708, %v702
    %v961 = vpack.c.b16 %v715, %v709
    %v962 = vpack.c.b16 %v716, %v710
    %v963 = vpack.c.b16 %v717, %v711
    %v964 = vpack.c.b16 %v718, %v712
    %v965 = vpack.c.b16 %v719, %v713
    %v966 = vpack.c.b16 %v720, %v714
    %v967 = vpack.c.b16 %v727, %v721
    %v968 = vpack.c.b16 %v728, %v722
    %v969 = vpack.c.b16 %v729, %v723
    %v970 = vpack.c.b16 %v730, %v724
    %v971 = vpack.c.b16 %v731, %v725
    %v972 = vpack.c.b16 %v732, %v726
    %v973 = vpack.c.b16 %v739, %v733
    %v974 = vpack.c.b16 %v740, %v734
    %v975 = vpack.c.b16 %v741, %v735
    %v976 = vpack.c.b16 %v742, %v736
    %v977 = vpack.c.b16 %v743, %v737
    %v978 = vpack.c.b16 %v744, %v738
    %v979 = vpack.c.b16 %v751, %v745
    %v980 = vpack.c.b16 %v752, %v746
    %v981 = vpack.c.b16 %v753, %v747
    %v982 = vpack.c.b16 %v754, %v748
    %v983 = vpack.c.b16 %v755, %v749
    %v984 = vpack.c.b16 %v756, %v750
    %v985 = vpack.c.b16 %v763, %v757
    %v986 = vpack.c.b16 %v764, %v758
    %v987 = vpack.c.b16 %v765, %v759
    %v988 = vpack.c.b16 %v766, %v760
    %v989 = vpack.c.b16 %v767, %v761
    %v990 = vpack.c.b16 %v768, %v762
    %v991 = vpack.c.b16 %v775, %v769
    %v992 = vpack.c.b16 %v776, %v770
    %v993 = vpack.c.b16 %v777, %v771
    %v994 = vpack.c.b16 %v778, %v772
    %v995 = vpack.c.b16 %v779, %v773
    %v996 = vpack.c.b16 %v780, %v774
    %v997 = vpack.c.b16 %v787, %v781
    %v998 = vpack.c.b16 %v788, %v782
    %v999 = vpack.c.b16 %v789, %v783
    %v1000 = vpack.c.b16 %v790, %v784
    %v1001 = vpack.c.b16 %v791, %v785
    %v1002 = vpack.c.b16 %v792, %v786
    %v1003 = vpack.c.b16 %v799, %v793
    %v1004 = vpack.c.b16 %v800, %v794
    %v1005 = vpack.c.b16 %v801, %v795
    %v1006 = vpack.c.b16 %v802, %v796
    %v1007 = vpack.c.b16 %v803, %v797
    %v1008 = vpack.c.b16 %v804, %v798
    %v1009 = vpack.c.b16 %v811, %v805
    %v1010 = vpack.c.b16 %v812, %v806
    %v1011 = vpack.c.b16 %v813, %v807
    %v1012 = vpack.c.b16 %v814, %v808
    %v1013 = vpack.c.b16 %v815, %v809
    %v1014 = vpack.c.b16 %v816, %v810
    %v1015 = vpack.c.b16 %v823, %v817
    %v1016 = vpack.c.b16 %v824, %v818
    %v1017 = vpack.c.b16 %v825, %v819
    %v1018 = vpack.c.b16 %v826, %v820
    %v1019 = vpack.c.b16 %v827, %v821
    %v1020 = vpack.c.b16 %v828, %v822
    %v1021 = vpack.c.b16 %v835, %v829
    %v1022 = vpack.c.b16 %v836, %v830
    %v1023 = vpack.c.b16 %v837, %v831
    %v1024 = vpack.c.b16 %v838, %v832
    %v1025 = vpack.c.b16 %v839, %v833
    %v1026 = vpack.c.b16 %v840, %v834
    %v1027 = vpack.c.b16 %v841, %v841
    %v1028 = vpack.c.b16 %v842, %v842
    %v1029 = vpack.c.b16 %v843, %v843
    %v1030 = vpack.c.b16 %v844, %v844
    %v1031 = vpack.c.b16 %v845, %v845
    %v1032 = vpack.c.b16 %v846, %v846
    %vm1213 = vcmask 834560
    %v1215 = vsel %vm1213, %v294, 0
    %vm1217 = vcmask 1042432
    %v1219 = vsel %vm1217, %v1027, 0
    %v1222 = vsel %vm1217, %v1028, 0
    %v1225 = vsel %vm1217, %v1029, 0
    %v1228 = vsel %vm1217, %v1030, 0
    %v1231 = vsel %vm1217, %v1031, 0
    %v1234 = vsel %vm1217, %v1032, 0
    %1236 = vmatprep.subr.bf16.mxu0 %v890
    %1237 = vmatpush1.bf16.msra.mxu0 %v889
    %1238 = vmatprep.subr.bf16.mxu0 %v884
    %1239 = vmatpush1.bf16.msra.mxu0 %v883
    %1240 = vmatprep.subr.bf16.mxu0 %v878
    %1241 = vmatpush1.bf16.msra.mxu0 %v877
    %1242 = vmatprep.subr.bf16.mxu0 %v872
    %1243 = vmatpush1.bf16.msra.mxu0 %v871
    %1244 = vmatprep.subr.bf16.mxu0 %v866
    %1245 = vmatpush1.bf16.msra.mxu0 %v865
    %1246 = vmatprep.subr.bf16.mxu0 %v860
    %1247 = vmatpush1.bf16.msra.mxu0 %v859
    %1248 = vmatprep.subr.bf16.mxu0 %v854
    %1249 = vmatpush1.bf16.msra.mxu0 %v853
    %1250 = vmatprep.subr.bf16.mxu0 %v848
    %1251 = vmatpush1.bf16.msra.mxu0 %v847
    %1252 = vmatprep.subr.bf16.mxu0 %v938
    %1253 = vmatpush2.bf16.msra.mxu0 %v937
    %1254 = vmatprep.subr.bf16.mxu0 %v932
    %1255 = vmatpush2.bf16.msra.mxu0 %v931
    %1256 = vmatprep.subr.bf16.mxu0 %v926
    %1257 = vmatpush2.bf16.msra.mxu0 %v925
    %1258 = vmatprep.subr.bf16.mxu0 %v920
    %1259 = vmatpush2.bf16.msra.mxu0 %v919
    %1260 = vmatprep.subr.bf16.mxu0 %v914
    %1261 = vmatpush2.bf16.msra.mxu0 %v913
    %1262 = vmatprep.subr.bf16.mxu0 %v908
    %1263 = vmatpush2.bf16.msra.mxu0 %v907
    %1264 = vmatprep.subr.bf16.mxu0 %v902
    %1265 = vmatpush2.bf16.msra.mxu0 %v901
    %1266 = vmatprep.subr.bf16.mxu0 %v896
    %1267 = vmatpush2.bf16.msra.mxu0 %v895
    %1268 = vmatprep.mubr.bf16.mxu0 %v292
    %1269 = vmatmul.mubr.bf16.gmra.mxu0 %v291
    %v1270 = vpop.f32.mrf.mxu0
    %v1271 = vadd.f32 0.0, %v1270
    %v1272 = vpop.f32.mrf.mxu0
    %v1273 = vadd.f32 0.0, %v1272
    %v1274 = vpop.f32.mrf.mxu0
    %v1275 = vpop.f32.mrf.mxu0
    %1276 = vdwg.mxu0
    %1277 = vmatprep.subr.bf16.mxu0 %v986
    %1278 = vmatpush1.bf16.msra.mxu0 %v985
    %1279 = vmatprep.subr.bf16.mxu0 %v980
    %1280 = vmatpush1.bf16.msra.mxu0 %v979
    %1281 = vmatprep.subr.bf16.mxu0 %v974
    %1282 = vmatpush1.bf16.msra.mxu0 %v973
    %1283 = vmatprep.subr.bf16.mxu0 %v968
    %1284 = vmatpush1.bf16.msra.mxu0 %v967
    %1285 = vmatprep.subr.bf16.mxu0 %v962
    %1286 = vmatpush1.bf16.msra.mxu0 %v961
    %1287 = vmatprep.subr.bf16.mxu0 %v956
    %1288 = vmatpush1.bf16.msra.mxu0 %v955
    %1289 = vmatprep.subr.bf16.mxu0 %v950
    %1290 = vmatpush1.bf16.msra.mxu0 %v949
    %1291 = vmatprep.subr.bf16.mxu0 %v944
    %1292 = vmatpush1.bf16.msra.mxu0 %v943
    %1293 = vmatprep.subr.bf16.mxu0 0
    %1294 = vmatpush2.bf16.msra.mxu0 0
    %1295 = vmatprep.subr.bf16.mxu0 %v1222
    %1296 = vmatpush2.bf16.msra.mxu0 %v1219
    %1297 = vmatprep.subr.bf16.mxu0 %v1022
    %1298 = vmatpush2.bf16.msra.mxu0 %v1021
    %1299 = vmatprep.subr.bf16.mxu0 %v1016
    %1300 = vmatpush2.bf16.msra.mxu0 %v1015
    %1301 = vmatprep.subr.bf16.mxu0 %v1010
    %1302 = vmatpush2.bf16.msra.mxu0 %v1009
    %1303 = vmatprep.subr.bf16.mxu0 %v1004
    %1304 = vmatpush2.bf16.msra.mxu0 %v1003
    %1305 = vmatprep.subr.bf16.mxu0 %v998
    %1306 = vmatpush2.bf16.msra.mxu0 %v997
    %1307 = vmatprep.subr.bf16.mxu0 %v992
    %1308 = vmatpush2.bf16.msra.mxu0 %v991
    %1309 = vmatprep.mubr.bf16.mxu0 %v1215
    %1310 = vmatmul.mubr.bf16.gmra.mxu0 %v293
    %v1311 = vpop.f32.mrf.mxu0
    %v1312 = vadd.f32 %v1271, %v1311
    %v1313 = vpop.f32.mrf.mxu0
    %v1314 = vadd.f32 %v1273, %v1313
    %v1315 = vpop.f32.mrf.mxu0
    %v1316 = vpop.f32.mrf.mxu0
    %1317 = vdwg.mxu0
    %1318 = vmatprep.subr.bf16.mxu0 %v892
    %1319 = vmatpush1.bf16.msra.mxu0 %v891
    %1320 = vmatprep.subr.bf16.mxu0 %v886
    %1321 = vmatpush1.bf16.msra.mxu0 %v885
    %1322 = vmatprep.subr.bf16.mxu0 %v880
    %1323 = vmatpush1.bf16.msra.mxu0 %v879
    %1324 = vmatprep.subr.bf16.mxu0 %v874
    %1325 = vmatpush1.bf16.msra.mxu0 %v873
    %1326 = vmatprep.subr.bf16.mxu0 %v868
    %1327 = vmatpush1.bf16.msra.mxu0 %v867
    %1328 = vmatprep.subr.bf16.mxu0 %v862
    %1329 = vmatpush1.bf16.msra.mxu0 %v861
    %1330 = vmatprep.subr.bf16.mxu0 %v856
    %1331 = vmatpush1.bf16.msra.mxu0 %v855
    %1332 = vmatprep.subr.bf16.mxu0 %v850
    %1333 = vmatpush1.bf16.msra.mxu0 %v849
    %1334 = vmatprep.subr.bf16.mxu0 %v940
    %1335 = vmatpush2.bf16.msra.mxu0 %v939
    %1336 = vmatprep.subr.bf16.mxu0 %v934
    %1337 = vmatpush2.bf16.msra.mxu0 %v933
    %1338 = vmatprep.subr.bf16.mxu0 %v928
    %1339 = vmatpush2.bf16.msra.mxu0 %v927
    %1340 = vmatprep.subr.bf16.mxu0 %v922
    %1341 = vmatpush2.bf16.msra.mxu0 %v921
    %1342 = vmatprep.subr.bf16.mxu0 %v916
    %1343 = vmatpush2.bf16.msra.mxu0 %v915
    %1344 = vmatprep.subr.bf16.mxu0 %v910
    %1345 = vmatpush2.bf16.msra.mxu0 %v909
    %1346 = vmatprep.subr.bf16.mxu0 %v904
    %1347 = vmatpush2.bf16.msra.mxu0 %v903
    %1348 = vmatprep.subr.bf16.mxu0 %v898
    %1349 = vmatpush2.bf16.msra.mxu0 %v897
    %1350 = vmatprep.mubr.bf16.mxu0 %v292
    %1351 = vmatmul.mubr.bf16.gmra.mxu0 %v291
    %v1352 = vpop.f32.mrf.mxu0
    %v1353 = vadd.f32 0.0, %v1352
    %v1354 = vpop.f32.mrf.mxu0
    %v1355 = vadd.f32 0.0, %v1354
    %v1356 = vpop.f32.mrf.mxu0
    %v1357 = vpop.f32.mrf.mxu0
    %1358 = vdwg.mxu0
    %1359 = vmatprep.subr.bf16.mxu0 %v988
    %1360 = vmatpush1.bf16.msra.mxu0 %v987
    %1361 = vmatprep.subr.bf16.mxu0 %v982
    %1362 = vmatpush1.bf16.msra.mxu0 %v981
    %1363 = vmatprep.subr.bf16.mxu0 %v976
    %1364 = vmatpush1.bf16.msra.mxu0 %v975
    %1365 = vmatprep.subr.bf16.mxu0 %v970
    %1366 = vmatpush1.bf16.msra.mxu0 %v969
    %1367 = vmatprep.subr.bf16.mxu0 %v964
    %1368 = vmatpush1.bf16.msra.mxu0 %v963
    %1369 = vmatprep.subr.bf16.mxu0 %v958
    %1370 = vmatpush1.bf16.msra.mxu0 %v957
    %1371 = vmatprep.subr.bf16.mxu0 %v952
    %1372 = vmatpush1.bf16.msra.mxu0 %v951
    %1373 = vmatprep.subr.bf16.mxu0 %v946
    %1374 = vmatpush1.bf16.msra.mxu0 %v945
    %1375 = vmatprep.subr.bf16.mxu0 0
    %1376 = vmatpush2.bf16.msra.mxu0 0
    %1377 = vmatprep.subr.bf16.mxu0 %v1228
    %1378 = vmatpush2.bf16.msra.mxu0 %v1225
    %1379 = vmatprep.subr.bf16.mxu0 %v1024
    %1380 = vmatpush2.bf16.msra.mxu0 %v1023
    %1381 = vmatprep.subr.bf16.mxu0 %v1018
    %1382 = vmatpush2.bf16.msra.mxu0 %v1017
    %1383 = vmatprep.subr.bf16.mxu0 %v1012
    %1384 = vmatpush2.bf16.msra.mxu0 %v1011
    %1385 = vmatprep.subr.bf16.mxu0 %v1006
    %1386 = vmatpush2.bf16.msra.mxu0 %v1005
    %1387 = vmatprep.subr.bf16.mxu0 %v1000
    %1388 = vmatpush2.bf16.msra.mxu0 %v999
    %1389 = vmatprep.subr.bf16.mxu0 %v994
    %1390 = vmatpush2.bf16.msra.mxu0 %v993
    %1391 = vmatprep.mubr.bf16.mxu0 %v1215
    %1392 = vmatmul.mubr.bf16.gmra.mxu0 %v293
    %v1393 = vpop.f32.mrf.mxu0
    %v1394 = vadd.f32 %v1353, %v1393
    %v1395 = vpop.f32.mrf.mxu0
    %v1396 = vadd.f32 %v1355, %v1395
    %v1397 = vpop.f32.mrf.mxu0
    %v1398 = vpop.f32.mrf.mxu0
    %1399 = vdwg.mxu0
    %1400 = vmatprep.subr.bf16.mxu0 %v894
    %1401 = vmatpush1.bf16.msra.mxu0 %v893
    %1402 = vmatprep.subr.bf16.mxu0 %v888
    %1403 = vmatpush1.bf16.msra.mxu0 %v887
    %1404 = vmatprep.subr.bf16.mxu0 %v882
    %1405 = vmatpush1.bf16.msra.mxu0 %v881
    %1406 = vmatprep.subr.bf16.mxu0 %v876
    %1407 = vmatpush1.bf16.msra.mxu0 %v875
    %1408 = vmatprep.subr.bf16.mxu0 %v870
    %1409 = vmatpush1.bf16.msra.mxu0 %v869
    %1410 = vmatprep.subr.bf16.mxu0 %v864
    %1411 = vmatpush1.bf16.msra.mxu0 %v863
    %1412 = vmatprep.subr.bf16.mxu0 %v858
    %1413 = vmatpush1.bf16.msra.mxu0 %v857
    %1414 = vmatprep.subr.bf16.mxu0 %v852
    %1415 = vmatpush1.bf16.msra.mxu0 %v851
    %1416 = vmatprep.subr.bf16.mxu0 %v942
    %1417 = vmatpush2.bf16.msra.mxu0 %v941
    %1418 = vmatprep.subr.bf16.mxu0 %v936
    %1419 = vmatpush2.bf16.msra.mxu0 %v935
    %1420 = vmatprep.subr.bf16.mxu0 %v930
    %1421 = vmatpush2.bf16.msra.mxu0 %v929
    %1422 = vmatprep.subr.bf16.mxu0 %v924
    %1423 = vmatpush2.bf16.msra.mxu0 %v923
    %1424 = vmatprep.subr.bf16.mxu0 %v918
    %1425 = vmatpush2.bf16.msra.mxu0 %v917
    %1426 = vmatprep.subr.bf16.mxu0 %v912
    %1427 = vmatpush2.bf16.msra.mxu0 %v911
    %1428 = vmatprep.subr.bf16.mxu0 %v906
    %1429 = vmatpush2.bf16.msra.mxu0 %v905
    %1430 = vmatprep.subr.bf16.mxu0 %v900
    %1431 = vmatpush2.bf16.msra.mxu0 %v899
    %1432 = vmatprep.mubr.bf16.mxu0 %v292
    %1433 = vmatmul.mubr.bf16.gmra.mxu0 %v291
    %v1434 = vpop.f32.mrf.mxu0
    %v1435 = vadd.f32 0.0, %v1434
    %v1436 = vpop.f32.mrf.mxu0
    %v1437 = vadd.f32 0.0, %v1436
    %v1438 = vpop.f32.mrf.mxu0
    %v1439 = vpop.f32.mrf.mxu0
    %1440 = vdwg.mxu0
    %1441 = vmatprep.subr.bf16.mxu0 %v990
    %1442 = vmatpush1.bf16.msra.mxu0 %v989
    %1443 = vmatprep.subr.bf16.mxu0 %v984
    %1444 = vmatpush1.bf16.msra.mxu0 %v983
    %1445 = vmatprep.subr.bf16.mxu0 %v978
    %1446 = vmatpush1.bf16.msra.mxu0 %v977
    %1447 = vmatprep.subr.bf16.mxu0 %v972
    %1448 = vmatpush1.bf16.msra.mxu0 %v971
    %1449 = vmatprep.subr.bf16.mxu0 %v966
    %1450 = vmatpush1.bf16.msra.mxu0 %v965
    %1451 = vmatprep.subr.bf16.mxu0 %v960
    %1452 = vmatpush1.bf16.msra.mxu0 %v959
    %1453 = vmatprep.subr.bf16.mxu0 %v954
    %1454 = vmatpush1.bf16.msra.mxu0 %v953
    %1455 = vmatprep.subr.bf16.mxu0 %v948
    %1456 = vmatpush1.bf16.msra.mxu0 %v947
    %1457 = vmatprep.subr.bf16.mxu0 0
    %1458 = vmatpush2.bf16.msra.mxu0 0
    %1459 = vmatprep.subr.bf16.mxu0 %v1234
    %1460 = vmatpush2.bf16.msra.mxu0 %v1231
    %1461 = vmatprep.subr.bf16.mxu0 %v1026
    %1462 = vmatpush2.bf16.msra.mxu0 %v1025
    %1463 = vmatprep.subr.bf16.mxu0 %v1020
    %1464 = vmatpush2.bf16.msra.mxu0 %v1019
    %1465 = vmatprep.subr.bf16.mxu0 %v1014
    %1466 = vmatpush2.bf16.msra.mxu0 %v1013
    %1467 = vmatprep.subr.bf16.mxu0 %v1008
    %1468 = vmatpush2.bf16.msra.mxu0 %v1007
    %1469 = vmatprep.subr.bf16.mxu0 %v1002
    %1470 = vmatpush2.bf16.msra.mxu0 %v1001
    %1471 = vmatprep.subr.bf16.mxu0 %v996
    %1472 = vmatpush2.bf16.msra.mxu0 %v995
    %1473 = vmatprep.mubr.bf16.mxu0 %v1215
    %1474 = vmatmul.mubr.bf16.gmra.mxu0 %v293
    %v1475 = vpop.f32.mrf.mxu0
    %v1476 = vadd.f32 %v1435, %v1475
    %v1477 = vpop.f32.mrf.mxu0
    %v1478 = vadd.f32 %v1437, %v1477
    %v1479 = vpop.f32.mrf.mxu0
    %v1480 = vpop.f32.mrf.mxu0
    %1481 = vdwg.mxu0
    %1484 = vrot.lane.b32.xlu0 %v1314, 64
    %v1485 = vpop.permute.xlu0 %1484
    %1486 = vrot.lane.b32.xlu0 %v1394, 64
    %v1487 = vpop.permute.xlu0 %1486
    %vm1488 = vcmask 523264
    %v1489 = vsel %vm1488, %v1485, %v1487
    %v1492 = vmax.f32 %v1312, %v1489
    %v1493 = vmax.f32 %v1314, %v1487
    %1496 = vrot.lane.b32.xlu0 %v1476, 64
    %v1497 = vpop.permute.xlu0 %1496
    %1498 = vrot.lane.b32.xlu0 %v1478, 64
    %v1499 = vpop.permute.xlu0 %1498
    %v1500 = vsel %vm1488, %v1497, %v1499
    %v1503 = vmax.f32 %v1396, %v1500
    %v1504 = vmax.f32 %v1476, %v1499
    %v1505 = vmax.f32 %v1492, %v1503
    %v1506 = vmax.f32 %v1493, %v1504
    %v1507 = vld [vmem:[%s2] sm:$0x3]
    %v1509 = vlaneseq
    %v1510 = vshrl.u32 %v1509, 7
    %v1511 = vsub.s32 0, %v1510
    %v1512 = vrot.slane %v1507, %v1511
    %v1513 = vlaneseq
    %v1514 = vshrl.u32 %v1513, 7
    %v1515 = vsub.s32 1, %v1514
    %v1516 = vrot.slane %v1507, %v1515
    %v1519 = vadd.f32 %v1505, %v1512
    %v1520 = vadd.f32 %v1506, %v1516
    %v1521 = vmax.f32 %v1519, 0.0
    %v1522 = vmax.f32 %v1520, 0.0
    %v1523 = vpack.c.bf16 %v1521, %v1521
    %v1524 = vpack.c.bf16 %v1522, %v1522
    %v1525 = vld [vmem:[#allocation7] sm:$0xf]
    %v1526 = vld [vmem:[#allocation7 + $0x4] sm:$0xf]
    %v1527 = vld [vmem:[#allocation7 + $0x8] sm:$0xf]
    %v1528 = vld [vmem:[#allocation7 + $0xc] sm:$0xf]
    %v1529 = vld [vmem:[#allocation7 + $0x10] sm:$0xf]
    %v1530 = vld [vmem:[#allocation7 + $0x14] sm:$0xf]
    %v1531 = vld [vmem:[#allocation7 + $0x18] sm:$0xf]
    %v1532 = vld [vmem:[#allocation7 + $0x1c] sm:$0xf]
    %v1533 = vld [vmem:[#allocation7 + $0x20] sm:$0xf]
    %v1534 = vld [vmem:[#allocation7 + $0x24] sm:$0xf]
    %v1535 = vld [vmem:[#allocation7 + $0x28] sm:$0xf]
    %v1536 = vld [vmem:[#allocation7 + $0x2c] sm:$0xf]
    %v1537 = vld [vmem:[#allocation7 + $0x30] sm:$0xf]
    %v1538 = vld [vmem:[#allocation7 + $0x34] sm:$0xf]
    %v1539 = vld [vmem:[#allocation7 + $0x38] sm:$0xf]
    %v1540 = vld [vmem:[#allocation7 + $0x3c] sm:$0xf]
    %v1541 = vld [vmem:[#allocation7 + $0x40] sm:$0xf]
    %v1542 = vld [vmem:[#allocation7 + $0x44] sm:$0xf]
    %v1543 = vld [vmem:[#allocation7 + $0x48] sm:$0xf]
    %v1544 = vld [vmem:[#allocation7 + $0x4c] sm:$0xf]
    %v1545 = vld [vmem:[#allocation7 + $0x50] sm:$0xf]
    %v1546 = vld [vmem:[#allocation7 + $0x54] sm:$0xf]
    %v1547 = vld [vmem:[#allocation7 + $0x58] sm:$0xf]
    %v1548 = vld [vmem:[#allocation7 + $0x5c] sm:$0xf]
    %v1573 = vunpack.c.l.b16 %v1525
    %v1574 = vunpack.c.l.b16 %v1526
    %v1575 = vunpack.c.l.b16 %v1527
    %v1576 = vunpack.c.l.b16 %v1528
    %v1577 = vunpack.c.l.b16 %v1529
    %v1578 = vunpack.c.l.b16 %v1530
    %v1579 = vunpack.c.l.b16 %v1531
    %v1580 = vunpack.c.l.b16 %v1532
    %v1581 = vunpack.c.l.b16 %v1533
    %v1582 = vunpack.c.l.b16 %v1534
    %v1583 = vunpack.c.l.b16 %v1535
    %v1584 = vunpack.c.l.b16 %v1536
    %v1585 = vunpack.c.l.b16 %v1537
    %v1586 = vunpack.c.l.b16 %v1538
    %v1587 = vunpack.c.l.b16 %v1539
    %v1588 = vunpack.c.l.b16 %v1540
    %v1589 = vunpack.c.l.b16 %v1541
    %v1590 = vunpack.c.l.b16 %v1542
    %v1591 = vunpack.c.l.b16 %v1543
    %v1592 = vunpack.c.l.b16 %v1544
    %v1593 = vunpack.c.l.b16 %v1545
    %v1594 = vunpack.c.l.b16 %v1546
    %v1595 = vunpack.c.l.b16 %v1547
    %v1596 = vunpack.c.l.b16 %v1548
    %v1597 = vpack.c.b16 %v1574, %v1573
    %v1598 = vpack.c.b16 %v1576, %v1575
    %v1599 = vpack.c.b16 %v1578, %v1577
    %v1600 = vpack.c.b16 %v1580, %v1579
    %v1601 = vpack.c.b16 %v1582, %v1581
    %v1602 = vpack.c.b16 %v1584, %v1583
    %v1603 = vpack.c.b16 %v1586, %v1585
    %v1604 = vpack.c.b16 %v1588, %v1587
    %v1605 = vpack.c.b16 %v1590, %v1589
    %v1606 = vpack.c.b16 %v1592, %v1591
    %v1607 = vpack.c.b16 %v1594, %v1593
    %v1608 = vpack.c.b16 %v1596, %v1595
    %v1622 = vsel %vm1488, %v1524, 0
    %1624 = vmatprep.subr.bf16.mxu0 0
    %1625 = vmatpush1.bf16.msra.mxu0 %v1604
    %1626 = vmatprep.subr.bf16.mxu0 0
    %1627 = vmatpush1.bf16.msra.mxu0 %v1603
    %1628 = vmatprep.subr.bf16.mxu0 0
    %1629 = vmatpush1.bf16.msra.mxu0 %v1602
    %1630 = vmatprep.subr.bf16.mxu0 0
    %1631 = vmatpush1.bf16.msra.mxu0 %v1601
    %1632 = vmatprep.subr.bf16.mxu0 0
    %1633 = vmatpush1.bf16.msra.mxu0 %v1600
    %1634 = vmatprep.subr.bf16.mxu0 0
    %1635 = vmatpush1.bf16.msra.mxu0 %v1599
    %1636 = vmatprep.subr.bf16.mxu0 0
    %1637 = vmatpush1.bf16.msra.mxu0 %v1598
    %1638 = vmatprep.subr.bf16.mxu0 0
    %1639 = vmatpush1.bf16.msra.mxu0 %v1597
    %1640 = vmatprep.subr.bf16.mxu0 0
    %1641 = vmatpush2.bf16.msra.mxu0 0
    %1642 = vmatprep.subr.bf16.mxu0 0
    %1643 = vmatpush2.bf16.msra.mxu0 0
    %1644 = vmatprep.subr.bf16.mxu0 0
    %1645 = vmatpush2.bf16.msra.mxu0 0
    %1646 = vmatprep.subr.bf16.mxu0 0
    %1647 = vmatpush2.bf16.msra.mxu0 0
    %1648 = vmatprep.subr.bf16.mxu0 0
    %1649 = vmatpush2.bf16.msra.mxu0 %v1608
    %1650 = vmatprep.subr.bf16.mxu0 0
    %1651 = vmatpush2.bf16.msra.mxu0 %v1607
    %1652 = vmatprep.subr.bf16.mxu0 0
    %1653 = vmatpush2.bf16.msra.mxu0 %v1606
    %1654 = vmatprep.subr.bf16.mxu0 0
    %1655 = vmatpush2.bf16.msra.mxu0 %v1605
    %1656 = vmatprep.mubr.bf16.mxu0 %v1622
    %1657 = vmatmul.mubr.bf16.gmra.mxu0 %v1523
    %v1658 = vpop.f32.mrf.mxu0
    %v1659 = vadd.f32 0.0, %v1658
    %v1660 = vpop.f32.mrf.mxu0
    %v1661 = vpop.f32.mrf.mxu0
    %v1662 = vpop.f32.mrf.mxu0
    %1663 = vdwg.mxu0
    %1665 = vrot.lane.b32.xlu0 %v1659, 104
    %v1666 = vpop.permute.xlu0 %1665
    %v1668 = vmax.f32 %v1659, %v1666
    %1670 = vrot.lane.b32.xlu0 %v1668, 80
    %v1671 = vpop.permute.xlu0 %1670
    %v1673 = vmax.f32 %v1668, %v1671
    %v1674 = vld [vmem:[%s4] sm:$0x1]
    %v1676 = vlaneseq
    %v1677 = vshrl.u32 %v1676, 7
    %v1678 = vsub.s32 0, %v1677
    %v1679 = vrot.slane %v1674, %v1678
    %v1681 = vadd.f32 %v1673, %v1679
    %v1682 = vmax.f32 %v1681, 0.0
    %v1683 = vpack.c.bf16 %v1682, %v1682
    %v1684 = vld [vmem:[#allocation8] sm:$0xf]
    %v1685 = vld [vmem:[#allocation8 + $0x4] sm:$0xf]
    %v1686 = vld [vmem:[#allocation8 + $0x8] sm:$0xf]
    %v1687 = vld [vmem:[%s6] sm:$0x1]
    %v1689 = vlaneseq
    %v1690 = vshrl.u32 %v1689, 7
    %v1691 = vsub.s32 0, %v1690
    %v1692 = vrot.slane %v1687, %v1691
    %v1697 = vunpack.c.l.b16 %v1684
    %v1698 = vunpack.c.l.b16 %v1685
    %v1699 = vunpack.c.l.b16 %v1686
    %v1700 = vpack.c.b16 %v1698, %v1697
    %v1701 = vpack.c.b16 %v1699, %v1699
    %vm1703 = vcmask 195584
    %v1705 = vsel %vm1703, %v1683, 0
    %vm1707 = vcmask 1043456
    %v1709 = vsel %vm1707, %v1701, 0
    %1711 = vmatprep.subr.bf16.mxu0 0
    %1712 = vmatpush1.bf16.msra.mxu0 0
    %1713 = vmatprep.subr.bf16.mxu0 0
    %1714 = vmatpush1.bf16.msra.mxu0 0
    %1715 = vmatprep.subr.bf16.mxu0 0
    %1716 = vmatpush1.bf16.msra.mxu0 0
    %1717 = vmatprep.subr.bf16.mxu0 0
    %1718 = vmatpush1.bf16.msra.mxu0 0
    %1719 = vmatprep.subr.bf16.mxu0 0
    %1720 = vmatpush1.bf16.msra.mxu0 0
    %1721 = vmatprep.subr.bf16.mxu0 0
    %1722 = vmatpush1.bf16.msra.mxu0 0
    %1723 = vmatprep.subr.bf16.mxu0 0
    %1724 = vmatpush1.bf16.msra.mxu0 %v1709
    %1725 = vmatprep.subr.bf16.mxu0 0
    %1726 = vmatpush1.bf16.msra.mxu0 %v1700
    %1727 = vmatprep.subr.bf16.mxu0 0
    %1728 = vmatpush2.bf16.msra.mxu0 0
    %1729 = vmatprep.subr.bf16.mxu0 0
    %1730 = vmatpush2.bf16.msra.mxu0 0
    %1731 = vmatprep.subr.bf16.mxu0 0
    %1732 = vmatpush2.bf16.msra.mxu0 0
    %1733 = vmatprep.subr.bf16.mxu0 0
    %1734 = vmatpush2.bf16.msra.mxu0 0
    %1735 = vmatprep.subr.bf16.mxu0 0
    %1736 = vmatpush2.bf16.msra.mxu0 0
    %1737 = vmatprep.subr.bf16.mxu0 0
    %1738 = vmatpush2.bf16.msra.mxu0 0
    %1739 = vmatprep.subr.bf16.mxu0 0
    %1740 = vmatpush2.bf16.msra.mxu0 0
    %1741 = vmatprep.subr.bf16.mxu0 0
    %1742 = vmatpush2.bf16.msra.mxu0 0
    %1743 = vmatprep.mubr.bf16.mxu0 0
    %1744 = vmatmul.mubr.bf16.gmra.mxu0 %v1705
    %v1745 = vpop.f32.mrf.mxu0
    %v1746 = vadd.f32 %v1692, %v1745
    %v1747 = vpop.f32.mrf.mxu0
    %v1748 = vpop.f32.mrf.mxu0
    %v1749 = vpop.f32.mrf.mxu0
    %1750 = vdwg.mxu0
    %v1751 = vmax.f32 %v1746, 0.0
    %v1752 = vpack.c.bf16 %v1751, %v1751
    %v1753 = vld [vmem:[#allocation10] sm:$0xf]
    %v1754 = vld [vmem:[#allocation10 + $0x4] sm:$0xf]
    %v1755 = vld [vmem:[#allocation10 + $0x8] sm:$0xf]
    %v1756 = vld [vmem:[#allocation10 + $0xc] sm:$0xf]
    %v1757 = vld [vmem:[%s8] sm:$0x1]
    %v1759 = vlaneseq
    %v1760 = vshrl.u32 %v1759, 7
    %v1761 = vsub.s32 0, %v1760
    %v1762 = vrot.slane %v1757, %v1761
    %v1768 = vunpack.c.l.b16 %v1753
    %v1769 = vunpack.c.l.b16 %v1754
    %v1770 = vunpack.c.l.b16 %v1755
    %v1771 = vunpack.c.l.b16 %v1756
    %v1772 = vpack.c.b16 %v1769, %v1768
    %v1773 = vpack.c.b16 %v1771, %v1770
    %vm1776 = vcmask 261120
    %v1778 = vsel %vm1776, %v1752, 0
    %1780 = vmatprep.subr.bf16.mxu0 0
    %1781 = vmatpush1.bf16.msra.mxu0 0
    %1782 = vmatprep.subr.bf16.mxu0 0
    %1783 = vmatpush1.bf16.msra.mxu0 0
    %1784 = vmatprep.subr.bf16.mxu0 0
    %1785 = vmatpush1.bf16.msra.mxu0 0
    %1786 = vmatprep.subr.bf16.mxu0 0
    %1787 = vmatpush1.bf16.msra.mxu0 0
    %1788 = vmatprep.subr.bf16.mxu0 0
    %1789 = vmatpush1.bf16.msra.mxu0 0
    %1790 = vmatprep.subr.bf16.mxu0 0
    %1791 = vmatpush1.bf16.msra.mxu0 0
    %1792 = vmatprep.subr.bf16.mxu0 0
    %1793 = vmatpush1.bf16.msra.mxu0 %v1773
    %1794 = vmatprep.subr.bf16.mxu0 0
    %1795 = vmatpush1.bf16.msra.mxu0 %v1772
    %1796 = vmatprep.subr.bf16.mxu0 0
    %1797 = vmatpush2.bf16.msra.mxu0 0
    %1798 = vmatprep.subr.bf16.mxu0 0
    %1799 = vmatpush2.bf16.msra.mxu0 0
    %1800 = vmatprep.subr.bf16.mxu0 0
    %1801 = vmatpush2.bf16.msra.mxu0 0
    %1802 = vmatprep.subr.bf16.mxu0 0
    %1803 = vmatpush2.bf16.msra.mxu0 0
    %1804 = vmatprep.subr.bf16.mxu0 0
    %1805 = vmatpush2.bf16.msra.mxu0 0
    %1806 = vmatprep.subr.bf16.mxu0 0
    %1807 = vmatpush2.bf16.msra.mxu0 0
    %1808 = vmatprep.subr.bf16.mxu0 0
    %1809 = vmatpush2.bf16.msra.mxu0 0
    %1810 = vmatprep.subr.bf16.mxu0 0
    %1811 = vmatpush2.bf16.msra.mxu0 0
    %1812 = vmatprep.mubr.bf16.mxu0 0
    %1813 = vmatmul.mubr.bf16.gmra.mxu0 %v1778
    %v1814 = vpop.f32.mrf.mxu0
    %v1815 = vadd.f32 %v1762, %v1814
    %v1816 = vpop.f32.mrf.mxu0
    %v1817 = vpop.f32.mrf.mxu0
    %v1818 = vpop.f32.mrf.mxu0
    %1819 = vdwg.mxu0
    %1820 = vst [vmem:[#allocation11] sm:$0xff] %v1815
    // Predicated region
    $region58: #{tpu_custom_call.1} parent=1 // pred_check
      _
    $region59: #{tpu_custom_call.1} parent=1 // pred_check_branch
      %1822 = sbr.rel (0) target = $region61
    $region60: #{tpu_custom_call.1} parent=1 // pred_region
      %s1824 = ssub.s32 128, 128
      %1825 = vsyncadd [#allocation4], %s1824
      %s1827 = sshll.u32 [#allocation11], 4
      %s1828 = int_to_ptr.vmem [resolvable:$true] %s1827
      %1830 = dma.vmem_to_hbm [thread:$0]  %s1828, 128, %s9, [#allocation4]
    $region61: #{tpu_custom_call.1} parent=1 // pred_fallthru
      _
    // Predicated region
    $region62: #{tpu_custom_call.1} parent=1 // pred_check
      _
    $region63: #{tpu_custom_call.1} parent=1 // pred_check_branch
      %1832 = sbr.rel (0) target = $region65
    $region64: #{tpu_custom_call.1} parent=1 // pred_region
      %1833 = dma.done [#allocation4], 128
    $region65: #{tpu_custom_call.1} parent=1 // pred_fallthru
      _
    %1834 = vsyncpa [#allocation3], 1
    %1835 = vsyncpa [#allocation6], 1
    %1836 = vsyncpa [#allocation9], 1
    %1837 = vsyncpa [#allocation4], 1

</llo_original>
